<compile_context>
chip_gen: v6e
topology: v6e:2x2x1
jax: 0.10.0
libtpu: 0.0.40
codegen_flags: <defaults>
</compile_context>

<pallas_src>
import functools

import jax
import jax.numpy as jnp
from jax.experimental import pallas as pl
from jax.experimental.pallas import tpu as pltpu

VMEM = pltpu.MemorySpace.VMEM
SMEM = pltpu.MemorySpace.SMEM

KSIZE = 2          # conv + pool kernel size (fixed by the module)
OUT_CHANNELS = 4   # conv out channels (fixed by the module)


# ---------------------------------------------------------------------------
# Fused Critic forward kernel
# ---------------------------------------------------------------------------
def _critic_kernel(s_vec_ref, s_img_ref, act_ref,
                   w1_ref, b1_ref, w2_ref, b2_ref, w3_ref, b3_ref,
                   act_w_ref, act_b_ref,
                   conv_w_ref, conv_b_ref,                 # SMEM scalars
                   w_out_vec_ref, w_out_img_ref, w_out_act_ref,
                   out_b_ref,                              # SMEM scalar
                   o_ref, *, img_w, ksize):
    f32 = jnp.float32

    # ---------------- vector branch: 3-layer MLP (MXU) ----------------
    h = jnp.maximum(
        jnp.dot(s_vec_ref[...], w1_ref[...], preferred_element_type=f32) + b1_ref[...], 0.0)
    h = jnp.maximum(
        jnp.dot(h, w2_ref[...], preferred_element_type=f32) + b2_ref[...], 0.0)
    f_vec = jnp.maximum(
        jnp.dot(h, w3_ref[...], preferred_element_type=f32) + b3_ref[...], 0.0)
    # head contribution: elementwise-mul + lane reduce (XLU), NOT an N=1 MXU dot
    q = jnp.sum(f_vec * w_out_vec_ref[...], axis=-1, keepdims=True)          # (Bt, 1)

    # ---------------- action branch: Linear + ReLU ----------------
    f_act = jnp.maximum(
        jnp.dot(act_ref[...], act_w_ref[...], preferred_element_type=f32) + act_b_ref[...], 0.0)
    q = q + jnp.sum(f_act * w_out_act_ref[...], axis=-1, keepdims=True)      # (Bt, 1)

    # ---------------- image branch: conv(k=2,s=1) -> maxpool(k=2,s=1) -> ReLU ----
    # Spatial is lane-dense: x is (Bt, C, H*W); a window offset (ki, kj) is a single
    # pltpu.roll by ki*W + kj on the lane axis.  Wrapped / out-of-range lane positions
    # are never masked in-kernel: they are multiplied by the zeros that were baked into
    # w_out_img at init, so only valid pooled positions contribute to the head.
    x = s_img_ref[...]                                   # (Bt, C, HW)
    Bt, C, HW = x.shape
    OC = w_out_img_ref.shape[0]

    # per-output-channel conv accumulators, seeded with the conv bias
    convs = [jnp.zeros((Bt, HW), f32) + conv_b_ref[oc] for oc in range(OC)]
    # (c, ki, kj) outermost / oc innermost: one shifted patch live at a time
    for c in range(C):
        xc = x[:, c, :]                                  # (Bt, HW)
        for ki in range(ksize):
            for kj in range(ksize):
                delta = ki * img_w + kj
                patch = xc if delta == 0 else pltpu.roll(xc, shift=HW - delta, axis=1)
                for oc in range(OC):
                    wv = conv_w_ref[((oc * C + c) * ksize + ki) * ksize + kj]  # SMEM scalar
                    convs[oc] = convs[oc] + patch * wv

    w_img = w_out_img_ref[...]                           # (OC, HW), zeros at invalid lanes
    for oc in range(OC):
        # MaxPool2d(k=2, s=1) with ReLU folded in: max over the 4 windows and 0
        pooled = jnp.zeros((Bt, HW), f32)
        for pi in range(ksize):
            for pj in range(ksize):
                delta = pi * img_w + pj
                shifted = (convs[oc] if delta == 0
                           else pltpu.roll(convs[oc], shift=HW - delta, axis=1))
                pooled = jnp.maximum(pooled, shifted)
        q = q + jnp.sum(pooled * w_img[oc:oc + 1, :], axis=-1, keepdims=True)

    # ---------------- output head ----------------
    o_ref[...] = q + out_b_ref[0]


# ---------------------------------------------------------------------------
# Forward pass wrapper: single fused pallas_call, batch grid, weights resident
# ---------------------------------------------------------------------------
@functools.partial(jax.jit, static_argnames=("b_tile",))
def critic_forward(params, state, action, *, b_tile=128):
    s_vec, s_img = state                       # s_img is NCHW, exactly like PyTorch
    B, d1 = s_vec.shape
    _, C, H, W = s_img.shape
    HW = H * W
    A = action.shape[-1]

    s_img_lanes = s_img.reshape(B, C, HW)      # free view: spatial becomes lane-dense

    bt = min(b_tile, B)
    grid = (pl.cdiv(B, bt),)

    w1, b1, w2, b2, w3, b3 = params["mlp"]

    def batch_spec(tail):                      # tiled over the batch axis
        nd = len(tail)
        return pl.BlockSpec((bt,) + tail, lambda b: (b,) + (0,) * nd)

    def const_spec(arr):                       # full block, constant index map
        nd = arr.ndim
        return pl.BlockSpec(arr.shape, lambda b: (0,) * nd)

    smem_spec = pl.BlockSpec(memory_space=SMEM)

    in_specs = [
        batch_spec((d1,)), batch_spec((C, HW)), batch_spec((A,)),
        const_spec(w1), const_spec(b1), const_spec(w2), const_spec(b2),
        const_spec(w3), const_spec(b3),
        const_spec(params["act_w"]), const_spec(params["act_b"]),
        smem_spec, smem_spec,                                  # conv_w (flat), conv_b
        const_spec(params["w_out_vec"]), const_spec(params["w_out_img"]),
        const_spec(params["w_out_act"]),
        smem_spec,                                             # out_b
    ]

    kernel = functools.partial(_critic_kernel, img_w=W, ksize=KSIZE)

    return pl.pallas_call(
        kernel,
        out_shape=jax.ShapeDtypeStruct((B, 1), jnp.float32),
        grid=grid,
        in_specs=in_specs,
        out_specs=pl.BlockSpec((bt, 1), lambda b: (b, 0)),
        compiler_params=pltpu.CompilerParams(
            dimension_semantics=("parallel",)),    # shards batch across TCs on v7x
    )(s_vec, s_img_lanes, action,
      w1, b1, w2, b2, w3, b3,
      params["act_w"], params["act_b"],
      params["conv_w"], params["conv_b"],
      params["w_out_vec"], params["w_out_img"], params["w_out_act"],
      params["out_b"])


# ---------------------------------------------------------------------------
# Parameter init (deterministic, PyTorch-default-style uniform bounds)
# ---------------------------------------------------------------------------
def _conv_out(n, k, s=1, p=0, d=1):
    return (n + 2 * p - d * (k - 1) - 1) // s + 1


def init_params(key, d1, img_hwc, action_dim, out_channels=OUT_CHANNELS, ksize=KSIZE):
    H, W, C = img_hwc
    keys = jax.random.split(key, 8)

    def lin(k, fan_in, fan_out):
        kw_, kb_ = jax.random.split(k)
        bound = 1.0 / (fan_in ** 0.5)
        w = jax.random.uniform(kw_, (fan_in, fan_out), jnp.float32, -bound, bound)
        b = jax.random.uniform(kb_, (1, fan_out), jnp.float32, -bound, bound)
        return w, b

    w1, b1 = lin(keys[0], d1, 4 * d1)
    w2, b2 = lin(keys[1], 4 * d1, 8 * d1)
    w3, b3 = lin(keys[2], 8 * d1, 16 * d1)

    fan_in_conv = C * ksize * ksize
    cbound = 1.0 / (fan_in_conv ** 0.5)
    conv_w = jax.random.uniform(keys[3], (out_channels, C, ksize, ksize),   # OIHW (torch)
                                jnp.float32, -cbound, cbound)
    conv_b = jax.random.uniform(keys[4], (out_channels,), jnp.float32, -cbound, cbound)

    act_w, act_b = lin(keys[5], action_dim, action_dim)

    h1, w1_ = _conv_out(H, ksize), _conv_out(W, ksize)
    h2, w2_ = _conv_out(h1, ksize), _conv_out(w1_, ksize)
    img_feat = out_channels * h2 * w2_
    cat_dim = 16 * d1 + img_feat + action_dim

    obound = 1.0 / (cat_dim ** 0.5)
    out_w = jax.random.uniform(keys[6], (1, cat_dim), jnp.float32, -obound, obound)
    out_b = jax.random.uniform(keys[7], (1,), jnp.float32, -obound, obound)

    # One-time split of the head weights per branch.  The image slice (torch NCHW-flatten
    # order of the pooled map) is scattered onto a zero (OC, H*W) lane grid at positions
    # h2*W + w2: the zeros at wrapped / out-of-range lanes double as the border mask, so
    # the kernel needs no explicit masking of its rolled conv/pool planes.
    w_out_vec = out_w[:, :16 * d1]
    w_img = out_w[0, 16 * d1:16 * d1 + img_feat].reshape(out_channels, h2, w2_)
    w_out_img = (jnp.zeros((out_channels, H, W), jnp.float32)
                 .at[:, :h2, :w2_].set(w_img)
                 .reshape(out_channels, H * W))
    w_out_act = out_w[:, 16 * d1 + img_feat:]

    return dict(mlp=(w1, b1, w2, b2, w3, b3),
                conv_w=conv_w.reshape(-1), conv_b=conv_b,
                act_w=act_w, act_b=act_b,
                w_out_vec=w_out_vec, w_out_img=w_out_img, w_out_act=w_out_act,
                out_b=out_b,
                # kept only for the pure-JAX reference check below
                conv_w_oihw=conv_w, out_w=out_w)


# ---------------------------------------------------------------------------
# Pure-JAX reference (mirrors the PyTorch module) for a runtime sanity check
# ---------------------------------------------------------------------------
def critic_reference(params, state, action):
    s_vec, s_img = state
    hi = jax.lax.Precision.HIGHEST
    w1, b1, w2, b2, w3, b3 = params["mlp"]

    h = jax.nn.relu(jnp.dot(s_vec, w1, precision=hi) + b1)
    h = jax.nn.relu(jnp.dot(h, w2, precision=hi) + b2)
    f_vec = jax.nn.relu(jnp.dot(h, w3, precision=hi) + b3)

    conv = jax.lax.conv_general_dilated(
        s_img, params["conv_w_oihw"], window_strides=(1, 1), padding="VALID",
        dimension_numbers=("NCHW", "OIHW", "NCHW"), precision=hi)
    conv = conv + params["conv_b"][None, :, None, None]
    pooled = jax.lax.reduce_window(conv, -jnp.inf, jax.lax.max,
                                   (1, 1, KSIZE, KSIZE), (1, 1, 1, 1), "VALID")
    f_img = jax.nn.relu(pooled).reshape(s_img.shape[0], -1)        # NCHW flatten

    f_act = jax.nn.relu(jnp.dot(action, params["act_w"], precision=hi) + params["act_b"])

    feats = jnp.concatenate([f_vec, f_img, f_act], axis=1)
    return jnp.dot(feats, params["out_w"].T, precision=hi) + params["out_b"]


if __name__ == "__main__":
    B = 2
    D1 = 8                 # 1-D state dim
    H, W, C = 16, 16, 4    # image state (tensor is NCHW like PyTorch)
    ACTION_DIM = 4

    key = jax.random.PRNGKey(0)
    k_param, k_sv, k_si, k_act = jax.random.split(key, 4)

    params = init_params(k_param, D1, (H, W, C), ACTION_DIM)

    s_vec = jax.random.normal(k_sv, (B, D1), jnp.float32)
    s_img = jax.random.normal(k_si, (B, C, H, W), jnp.float32)   # NCHW
    action = jax.random.normal(k_act, (B, ACTION_DIM), jnp.float32)

    q = critic_forward(params, [s_vec, s_img], action)
    q = jax.block_until_ready(q)

    q_ref = critic_reference(params, [s_vec, s_img], action)

    assert q.shape == (B, 1), q.shape
    assert bool(jnp.all(jnp.isfinite(q)))
    # all-f32 path: tolerance tightened from 1e-2 (atol 1e-4 only covers summation-order
    # differences between the fused per-branch reductions and the reference's single dot)
    assert bool(jnp.allclose(q, q_ref, rtol=1e-5, atol=1e-4)), (q, q_ref)
    print("KERNEL_OK")
</pallas_src>

<mosaic_0001>
module attributes {stable_mosaic.version = 11 : i64} {
  func.func @_critic_kernel(%arg0: i32, %arg1: memref<2x8xf32, #tpu.memory_space<vmem>>, %arg2: memref<2x4x256xf32, #tpu.memory_space<vmem>>, %arg3: memref<2x4xf32, #tpu.memory_space<vmem>>, %arg4: memref<8x32xf32, #tpu.memory_space<vmem>>, %arg5: memref<1x32xf32, #tpu.memory_space<vmem>>, %arg6: memref<32x64xf32, #tpu.memory_space<vmem>>, %arg7: memref<1x64xf32, #tpu.memory_space<vmem>>, %arg8: memref<64x128xf32, #tpu.memory_space<vmem>>, %arg9: memref<1x128xf32, #tpu.memory_space<vmem>>, %arg10: memref<4x4xf32, #tpu.memory_space<vmem>>, %arg11: memref<1x4xf32, #tpu.memory_space<vmem>>, %arg12: memref<64xf32, #tpu.memory_space<smem>>, %arg13: memref<4xf32, #tpu.memory_space<smem>>, %arg14: memref<1x128xf32, #tpu.memory_space<vmem>>, %arg15: memref<4x256xf32, #tpu.memory_space<vmem>>, %arg16: memref<1x4xf32, #tpu.memory_space<vmem>>, %arg17: memref<1xf32, #tpu.memory_space<smem>>, %arg18: memref<2x1xf32, #tpu.memory_space<vmem>>) attributes {dimension_semantics = [#tpu.dimension_semantics<parallel>], iteration_bounds = array<i64: 1>, scalar_prefetch = 0 : i64, scratch_operands = 0 : i64, tpu.core_type = #tpu.core_type<tc>, window_params = [{transform_indices = @transform_0, window_bounds = array<i64: 2, 8>}, {transform_indices = @transform_1, window_bounds = array<i64: 2, 4, 256>}, {transform_indices = @transform_2, window_bounds = array<i64: 2, 4>}, {pipeline_mode = #tpu.pipeline_mode<synchronous>, transform_indices = @transform_3, window_bounds = array<i64: 8, 32>}, {pipeline_mode = #tpu.pipeline_mode<synchronous>, transform_indices = @transform_4, window_bounds = array<i64: 1, 32>}, {pipeline_mode = #tpu.pipeline_mode<synchronous>, transform_indices = @transform_5, window_bounds = array<i64: 32, 64>}, {pipeline_mode = #tpu.pipeline_mode<synchronous>, transform_indices = @transform_6, window_bounds = array<i64: 1, 64>}, {pipeline_mode = #tpu.pipeline_mode<synchronous>, transform_indices = @transform_7, window_bounds = array<i64: 64, 128>}, {pipeline_mode = #tpu.pipeline_mode<synchronous>, transform_indices = @transform_8, window_bounds = array<i64: 1, 128>}, {pipeline_mode = #tpu.pipeline_mode<synchronous>, transform_indices = @transform_9, window_bounds = array<i64: 4, 4>}, {pipeline_mode = #tpu.pipeline_mode<synchronous>, transform_indices = @transform_10, window_bounds = array<i64: 1, 4>}, {transform_indices = @transform_11, window_bounds = array<i64: 64>}, {transform_indices = @transform_12, window_bounds = array<i64: 4>}, {pipeline_mode = #tpu.pipeline_mode<synchronous>, transform_indices = @transform_13, window_bounds = array<i64: 1, 128>}, {pipeline_mode = #tpu.pipeline_mode<synchronous>, transform_indices = @transform_14, window_bounds = array<i64: 4, 256>}, {pipeline_mode = #tpu.pipeline_mode<synchronous>, transform_indices = @transform_15, window_bounds = array<i64: 1, 4>}, {transform_indices = @transform_16, window_bounds = array<i64: 1>}, {transform_indices = @transform_17, window_bounds = array<i64: 2, 1>}]} {
    %c0 = arith.constant 0 : index
    %c0_0 = arith.constant 0 : index
    %0 = vector.load %arg1[%c0, %c0_0] : memref<2x8xf32, #tpu.memory_space<vmem>>, vector<2x8xf32>
    %c0_1 = arith.constant 0 : index
    %c0_2 = arith.constant 0 : index
    %1 = vector.load %arg4[%c0_1, %c0_2] : memref<8x32xf32, #tpu.memory_space<vmem>>, vector<8x32xf32>
    %cst = arith.constant dense<0.000000e+00> : vector<2x32xf32>
    %2 = tpu.matmul %0, %1, %cst {dimension_numbers = #tpu.dot_dimension_numbers<[1], [0], [0], [1], [0, 0, 1, 1], [], []>} : vector<2x8xf32>, vector<8x32xf32>, vector<2x32xf32> -> vector<2x32xf32>
    %c0_3 = arith.constant 0 : index
    %c0_4 = arith.constant 0 : index
    %3 = vector.load %arg5[%c0_3, %c0_4] : memref<1x32xf32, #tpu.memory_space<vmem>>, vector<1x32xf32>
    %4 = vector.broadcast %3 : vector<1x32xf32> to vector<2x32xf32>
    %5 = arith.addf %2, %4 : vector<2x32xf32>
    %cst_5 = arith.constant 0.000000e+00 : f32
    %6 = vector.broadcast %cst_5 : f32 to vector<2x32xf32>
    %7 = arith.maximumf %5, %6 : vector<2x32xf32>
    %c0_6 = arith.constant 0 : index
    %c0_7 = arith.constant 0 : index
    %8 = vector.load %arg6[%c0_6, %c0_7] : memref<32x64xf32, #tpu.memory_space<vmem>>, vector<32x64xf32>
    %cst_8 = arith.constant dense<0.000000e+00> : vector<2x64xf32>
    %9 = tpu.matmul %7, %8, %cst_8 {dimension_numbers = #tpu.dot_dimension_numbers<[1], [0], [0], [1], [0, 0, 1, 1], [], []>} : vector<2x32xf32>, vector<32x64xf32>, vector<2x64xf32> -> vector<2x64xf32>
    %c0_9 = arith.constant 0 : index
    %c0_10 = arith.constant 0 : index
    %10 = vector.load %arg7[%c0_9, %c0_10] : memref<1x64xf32, #tpu.memory_space<vmem>>, vector<1x64xf32>
    %11 = vector.broadcast %10 : vector<1x64xf32> to vector<2x64xf32>
    %12 = arith.addf %9, %11 : vector<2x64xf32>
    %cst_11 = arith.constant 0.000000e+00 : f32
    %13 = vector.broadcast %cst_11 : f32 to vector<2x64xf32>
    %14 = arith.maximumf %12, %13 : vector<2x64xf32>
    %c0_12 = arith.constant 0 : index
    %c0_13 = arith.constant 0 : index
    %15 = vector.load %arg8[%c0_12, %c0_13] : memref<64x128xf32, #tpu.memory_space<vmem>>, vector<64x128xf32>
    %cst_14 = arith.constant dense<0.000000e+00> : vector<2x128xf32>
    %16 = tpu.matmul %14, %15, %cst_14 {dimension_numbers = #tpu.dot_dimension_numbers<[1], [0], [0], [1], [0, 0, 1, 1], [], []>} : vector<2x64xf32>, vector<64x128xf32>, vector<2x128xf32> -> vector<2x128xf32>
    %c0_15 = arith.constant 0 : index
    %c0_16 = arith.constant 0 : index
    %17 = vector.load %arg9[%c0_15, %c0_16] : memref<1x128xf32, #tpu.memory_space<vmem>>, vector<1x128xf32>
    %18 = vector.broadcast %17 : vector<1x128xf32> to vector<2x128xf32>
    %19 = arith.addf %16, %18 : vector<2x128xf32>
    %cst_17 = arith.constant 0.000000e+00 : f32
    %20 = vector.broadcast %cst_17 : f32 to vector<2x128xf32>
    %21 = arith.maximumf %19, %20 : vector<2x128xf32>
    %c0_18 = arith.constant 0 : index
    %c0_19 = arith.constant 0 : index
    %22 = vector.load %arg14[%c0_18, %c0_19] : memref<1x128xf32, #tpu.memory_space<vmem>>, vector<1x128xf32>
    %23 = vector.broadcast %22 : vector<1x128xf32> to vector<2x128xf32>
    %24 = arith.mulf %21, %23 : vector<2x128xf32>
    %cst_20 = arith.constant dense<0.000000e+00> : vector<2xf32>
    %25 = vector.multi_reduction <add>, %24, %cst_20 [1] : vector<2x128xf32> to vector<2xf32>
    %26 = vector.shape_cast %25 : vector<2xf32> to vector<2x1xf32>
    %c0_21 = arith.constant 0 : index
    %c0_22 = arith.constant 0 : index
    %27 = vector.load %arg3[%c0_21, %c0_22] : memref<2x4xf32, #tpu.memory_space<vmem>>, vector<2x4xf32>
    %c0_23 = arith.constant 0 : index
    %c0_24 = arith.constant 0 : index
    %28 = vector.load %arg10[%c0_23, %c0_24] : memref<4x4xf32, #tpu.memory_space<vmem>>, vector<4x4xf32>
    %cst_25 = arith.constant dense<0.000000e+00> : vector<2x4xf32>
    %29 = tpu.matmul %27, %28, %cst_25 {dimension_numbers = #tpu.dot_dimension_numbers<[1], [0], [0], [1], [0, 0, 1, 1], [], []>} : vector<2x4xf32>, vector<4x4xf32>, vector<2x4xf32> -> vector<2x4xf32>
    %c0_26 = arith.constant 0 : index
    %c0_27 = arith.constant 0 : index
    %30 = vector.load %arg11[%c0_26, %c0_27] : memref<1x4xf32, #tpu.memory_space<vmem>>, vector<1x4xf32>
    %31 = vector.broadcast %30 : vector<1x4xf32> to vector<2x4xf32>
    %32 = arith.addf %29, %31 : vector<2x4xf32>
    %cst_28 = arith.constant 0.000000e+00 : f32
    %33 = vector.broadcast %cst_28 : f32 to vector<2x4xf32>
    %34 = arith.maximumf %32, %33 : vector<2x4xf32>
    %c0_29 = arith.constant 0 : index
    %c0_30 = arith.constant 0 : index
    %35 = vector.load %arg16[%c0_29, %c0_30] : memref<1x4xf32, #tpu.memory_space<vmem>>, vector<1x4xf32>
    %36 = vector.broadcast %35 : vector<1x4xf32> to vector<2x4xf32>
    %37 = arith.mulf %34, %36 : vector<2x4xf32>
    %cst_31 = arith.constant dense<0.000000e+00> : vector<2xf32>
    %38 = vector.multi_reduction <add>, %37, %cst_31 [1] : vector<2x4xf32> to vector<2xf32>
    %39 = vector.shape_cast %38 : vector<2xf32> to vector<2x1xf32>
    %40 = arith.addf %26, %39 : vector<2x1xf32>
    %c0_32 = arith.constant 0 : index
    %c0_33 = arith.constant 0 : index
    %c0_34 = arith.constant 0 : index
    %41 = vector.load %arg2[%c0_32, %c0_33, %c0_34] : memref<2x4x256xf32, #tpu.memory_space<vmem>>, vector<2x4x256xf32>
    %cst_35 = arith.constant 0.000000e+00 : f32
    %42 = vector.broadcast %cst_35 : f32 to vector<2x256xf32>
    %c0_36 = arith.constant 0 : index
    %43 = memref.load %arg13[%c0_36] : memref<4xf32, #tpu.memory_space<smem>>
    %44 = vector.broadcast %43 : f32 to vector<2x256xf32>
    %45 = arith.addf %42, %44 : vector<2x256xf32>
    %cst_37 = arith.constant 0.000000e+00 : f32
    %46 = vector.broadcast %cst_37 : f32 to vector<2x256xf32>
    %c1 = arith.constant 1 : index
    %47 = memref.load %arg13[%c1] : memref<4xf32, #tpu.memory_space<smem>>
    %48 = vector.broadcast %47 : f32 to vector<2x256xf32>
    %49 = arith.addf %46, %48 : vector<2x256xf32>
    %cst_38 = arith.constant 0.000000e+00 : f32
    %50 = vector.broadcast %cst_38 : f32 to vector<2x256xf32>
    %c2 = arith.constant 2 : index
    %51 = memref.load %arg13[%c2] : memref<4xf32, #tpu.memory_space<smem>>
    %52 = vector.broadcast %51 : f32 to vector<2x256xf32>
    %53 = arith.addf %50, %52 : vector<2x256xf32>
    %cst_39 = arith.constant 0.000000e+00 : f32
    %54 = vector.broadcast %cst_39 : f32 to vector<2x256xf32>
    %c3 = arith.constant 3 : index
    %55 = memref.load %arg13[%c3] : memref<4xf32, #tpu.memory_space<smem>>
    %56 = vector.broadcast %55 : f32 to vector<2x256xf32>
    %57 = arith.addf %54, %56 : vector<2x256xf32>
    %58 = vector.extract_strided_slice %41 {offsets = [0, 0, 0], sizes = [2, 1, 256], strides = [1, 1, 1]} : vector<2x4x256xf32> to vector<2x1x256xf32>
    %59 = vector.shape_cast %58 : vector<2x1x256xf32> to vector<2x256xf32>
    %c0_40 = arith.constant 0 : index
    %60 = memref.load %arg12[%c0_40] : memref<64xf32, #tpu.memory_space<smem>>
    %61 = vector.broadcast %60 : f32 to vector<2x256xf32>
    %62 = arith.mulf %59, %61 : vector<2x256xf32>
    %63 = arith.addf %45, %62 : vector<2x256xf32>
    %c16 = arith.constant 16 : index
    %64 = memref.load %arg12[%c16] : memref<64xf32, #tpu.memory_space<smem>>
    %65 = vector.broadcast %64 : f32 to vector<2x256xf32>
    %66 = arith.mulf %59, %65 : vector<2x256xf32>
    %67 = arith.addf %49, %66 : vector<2x256xf32>
    %c32 = arith.constant 32 : index
    %68 = memref.load %arg12[%c32] : memref<64xf32, #tpu.memory_space<smem>>
    %69 = vector.broadcast %68 : f32 to vector<2x256xf32>
    %70 = arith.mulf %59, %69 : vector<2x256xf32>
    %71 = arith.addf %53, %70 : vector<2x256xf32>
    %c48 = arith.constant 48 : index
    %72 = memref.load %arg12[%c48] : memref<64xf32, #tpu.memory_space<smem>>
    %73 = vector.broadcast %72 : f32 to vector<2x256xf32>
    %74 = arith.mulf %59, %73 : vector<2x256xf32>
    %75 = arith.addf %57, %74 : vector<2x256xf32>
    %c255_i32 = arith.constant 255 : i32
    %76 = tpu.dynamic_rotate %59 by %c255_i32 dim 1 : vector<2x256xf32>, i32 -> vector<2x256xf32>
    %c1_41 = arith.constant 1 : index
    %77 = memref.load %arg12[%c1_41] : memref<64xf32, #tpu.memory_space<smem>>
    %78 = vector.broadcast %77 : f32 to vector<2x256xf32>
    %79 = arith.mulf %76, %78 : vector<2x256xf32>
    %80 = arith.addf %63, %79 : vector<2x256xf32>
    %c17 = arith.constant 17 : index
    %81 = memref.load %arg12[%c17] : memref<64xf32, #tpu.memory_space<smem>>
    %82 = vector.broadcast %81 : f32 to vector<2x256xf32>
    %83 = arith.mulf %76, %82 : vector<2x256xf32>
    %84 = arith.addf %67, %83 : vector<2x256xf32>
    %c33 = arith.constant 33 : index
    %85 = memref.load %arg12[%c33] : memref<64xf32, #tpu.memory_space<smem>>
    %86 = vector.broadcast %85 : f32 to vector<2x256xf32>
    %87 = arith.mulf %76, %86 : vector<2x256xf32>
    %88 = arith.addf %71, %87 : vector<2x256xf32>
    %c49 = arith.constant 49 : index
    %89 = memref.load %arg12[%c49] : memref<64xf32, #tpu.memory_space<smem>>
    %90 = vector.broadcast %89 : f32 to vector<2x256xf32>
    %91 = arith.mulf %76, %90 : vector<2x256xf32>
    %92 = arith.addf %75, %91 : vector<2x256xf32>
    %c240_i32 = arith.constant 240 : i32
    %93 = tpu.dynamic_rotate %59 by %c240_i32 dim 1 : vector<2x256xf32>, i32 -> vector<2x256xf32>
    %c2_42 = arith.constant 2 : index
    %94 = memref.load %arg12[%c2_42] : memref<64xf32, #tpu.memory_space<smem>>
    %95 = vector.broadcast %94 : f32 to vector<2x256xf32>
    %96 = arith.mulf %93, %95 : vector<2x256xf32>
    %97 = arith.addf %80, %96 : vector<2x256xf32>
    %c18 = arith.constant 18 : index
    %98 = memref.load %arg12[%c18] : memref<64xf32, #tpu.memory_space<smem>>
    %99 = vector.broadcast %98 : f32 to vector<2x256xf32>
    %100 = arith.mulf %93, %99 : vector<2x256xf32>
    %101 = arith.addf %84, %100 : vector<2x256xf32>
    %c34 = arith.constant 34 : index
    %102 = memref.load %arg12[%c34] : memref<64xf32, #tpu.memory_space<smem>>
    %103 = vector.broadcast %102 : f32 to vector<2x256xf32>
    %104 = arith.mulf %93, %103 : vector<2x256xf32>
    %105 = arith.addf %88, %104 : vector<2x256xf32>
    %c50 = arith.constant 50 : index
    %106 = memref.load %arg12[%c50] : memref<64xf32, #tpu.memory_space<smem>>
    %107 = vector.broadcast %106 : f32 to vector<2x256xf32>
    %108 = arith.mulf %93, %107 : vector<2x256xf32>
    %109 = arith.addf %92, %108 : vector<2x256xf32>
    %c239_i32 = arith.constant 239 : i32
    %110 = tpu.dynamic_rotate %59 by %c239_i32 dim 1 : vector<2x256xf32>, i32 -> vector<2x256xf32>
    %c3_43 = arith.constant 3 : index
    %111 = memref.load %arg12[%c3_43] : memref<64xf32, #tpu.memory_space<smem>>
    %112 = vector.broadcast %111 : f32 to vector<2x256xf32>
    %113 = arith.mulf %110, %112 : vector<2x256xf32>
    %114 = arith.addf %97, %113 : vector<2x256xf32>
    %c19 = arith.constant 19 : index
    %115 = memref.load %arg12[%c19] : memref<64xf32, #tpu.memory_space<smem>>
    %116 = vector.broadcast %115 : f32 to vector<2x256xf32>
    %117 = arith.mulf %110, %116 : vector<2x256xf32>
    %118 = arith.addf %101, %117 : vector<2x256xf32>
    %c35 = arith.constant 35 : index
    %119 = memref.load %arg12[%c35] : memref<64xf32, #tpu.memory_space<smem>>
    %120 = vector.broadcast %119 : f32 to vector<2x256xf32>
    %121 = arith.mulf %110, %120 : vector<2x256xf32>
    %122 = arith.addf %105, %121 : vector<2x256xf32>
    %c51 = arith.constant 51 : index
    %123 = memref.load %arg12[%c51] : memref<64xf32, #tpu.memory_space<smem>>
    %124 = vector.broadcast %123 : f32 to vector<2x256xf32>
    %125 = arith.mulf %110, %124 : vector<2x256xf32>
    %126 = arith.addf %109, %125 : vector<2x256xf32>
    %127 = vector.extract_strided_slice %41 {offsets = [0, 1, 0], sizes = [2, 1, 256], strides = [1, 1, 1]} : vector<2x4x256xf32> to vector<2x1x256xf32>
    %128 = vector.shape_cast %127 : vector<2x1x256xf32> to vector<2x256xf32>
    %c4 = arith.constant 4 : index
    %129 = memref.load %arg12[%c4] : memref<64xf32, #tpu.memory_space<smem>>
    %130 = vector.broadcast %129 : f32 to vector<2x256xf32>
    %131 = arith.mulf %128, %130 : vector<2x256xf32>
    %132 = arith.addf %114, %131 : vector<2x256xf32>
    %c20 = arith.constant 20 : index
    %133 = memref.load %arg12[%c20] : memref<64xf32, #tpu.memory_space<smem>>
    %134 = vector.broadcast %133 : f32 to vector<2x256xf32>
    %135 = arith.mulf %128, %134 : vector<2x256xf32>
    %136 = arith.addf %118, %135 : vector<2x256xf32>
    %c36 = arith.constant 36 : index
    %137 = memref.load %arg12[%c36] : memref<64xf32, #tpu.memory_space<smem>>
    %138 = vector.broadcast %137 : f32 to vector<2x256xf32>
    %139 = arith.mulf %128, %138 : vector<2x256xf32>
    %140 = arith.addf %122, %139 : vector<2x256xf32>
    %c52 = arith.constant 52 : index
    %141 = memref.load %arg12[%c52] : memref<64xf32, #tpu.memory_space<smem>>
    %142 = vector.broadcast %141 : f32 to vector<2x256xf32>
    %143 = arith.mulf %128, %142 : vector<2x256xf32>
    %144 = arith.addf %126, %143 : vector<2x256xf32>
    %c255_i32_44 = arith.constant 255 : i32
    %145 = tpu.dynamic_rotate %128 by %c255_i32_44 dim 1 : vector<2x256xf32>, i32 -> vector<2x256xf32>
    %c5 = arith.constant 5 : index
    %146 = memref.load %arg12[%c5] : memref<64xf32, #tpu.memory_space<smem>>
    %147 = vector.broadcast %146 : f32 to vector<2x256xf32>
    %148 = arith.mulf %145, %147 : vector<2x256xf32>
    %149 = arith.addf %132, %148 : vector<2x256xf32>
    %c21 = arith.constant 21 : index
    %150 = memref.load %arg12[%c21] : memref<64xf32, #tpu.memory_space<smem>>
    %151 = vector.broadcast %150 : f32 to vector<2x256xf32>
    %152 = arith.mulf %145, %151 : vector<2x256xf32>
    %153 = arith.addf %136, %152 : vector<2x256xf32>
    %c37 = arith.constant 37 : index
    %154 = memref.load %arg12[%c37] : memref<64xf32, #tpu.memory_space<smem>>
    %155 = vector.broadcast %154 : f32 to vector<2x256xf32>
    %156 = arith.mulf %145, %155 : vector<2x256xf32>
    %157 = arith.addf %140, %156 : vector<2x256xf32>
    %c53 = arith.constant 53 : index
    %158 = memref.load %arg12[%c53] : memref<64xf32, #tpu.memory_space<smem>>
    %159 = vector.broadcast %158 : f32 to vector<2x256xf32>
    %160 = arith.mulf %145, %159 : vector<2x256xf32>
    %161 = arith.addf %144, %160 : vector<2x256xf32>
    %c240_i32_45 = arith.constant 240 : i32
    %162 = tpu.dynamic_rotate %128 by %c240_i32_45 dim 1 : vector<2x256xf32>, i32 -> vector<2x256xf32>
    %c6 = arith.constant 6 : index
    %163 = memref.load %arg12[%c6] : memref<64xf32, #tpu.memory_space<smem>>
    %164 = vector.broadcast %163 : f32 to vector<2x256xf32>
    %165 = arith.mulf %162, %164 : vector<2x256xf32>
    %166 = arith.addf %149, %165 : vector<2x256xf32>
    %c22 = arith.constant 22 : index
    %167 = memref.load %arg12[%c22] : memref<64xf32, #tpu.memory_space<smem>>
    %168 = vector.broadcast %167 : f32 to vector<2x256xf32>
    %169 = arith.mulf %162, %168 : vector<2x256xf32>
    %170 = arith.addf %153, %169 : vector<2x256xf32>
    %c38 = arith.constant 38 : index
    %171 = memref.load %arg12[%c38] : memref<64xf32, #tpu.memory_space<smem>>
    %172 = vector.broadcast %171 : f32 to vector<2x256xf32>
    %173 = arith.mulf %162, %172 : vector<2x256xf32>
    %174 = arith.addf %157, %173 : vector<2x256xf32>
    %c54 = arith.constant 54 : index
    %175 = memref.load %arg12[%c54] : memref<64xf32, #tpu.memory_space<smem>>
    %176 = vector.broadcast %175 : f32 to vector<2x256xf32>
    %177 = arith.mulf %162, %176 : vector<2x256xf32>
    %178 = arith.addf %161, %177 : vector<2x256xf32>
    %c239_i32_46 = arith.constant 239 : i32
    %179 = tpu.dynamic_rotate %128 by %c239_i32_46 dim 1 : vector<2x256xf32>, i32 -> vector<2x256xf32>
    %c7 = arith.constant 7 : index
    %180 = memref.load %arg12[%c7] : memref<64xf32, #tpu.memory_space<smem>>
    %181 = vector.broadcast %180 : f32 to vector<2x256xf32>
    %182 = arith.mulf %179, %181 : vector<2x256xf32>
    %183 = arith.addf %166, %182 : vector<2x256xf32>
    %c23 = arith.constant 23 : index
    %184 = memref.load %arg12[%c23] : memref<64xf32, #tpu.memory_space<smem>>
    %185 = vector.broadcast %184 : f32 to vector<2x256xf32>
    %186 = arith.mulf %179, %185 : vector<2x256xf32>
    %187 = arith.addf %170, %186 : vector<2x256xf32>
    %c39 = arith.constant 39 : index
    %188 = memref.load %arg12[%c39] : memref<64xf32, #tpu.memory_space<smem>>
    %189 = vector.broadcast %188 : f32 to vector<2x256xf32>
    %190 = arith.mulf %179, %189 : vector<2x256xf32>
    %191 = arith.addf %174, %190 : vector<2x256xf32>
    %c55 = arith.constant 55 : index
    %192 = memref.load %arg12[%c55] : memref<64xf32, #tpu.memory_space<smem>>
    %193 = vector.broadcast %192 : f32 to vector<2x256xf32>
    %194 = arith.mulf %179, %193 : vector<2x256xf32>
    %195 = arith.addf %178, %194 : vector<2x256xf32>
    %196 = vector.extract_strided_slice %41 {offsets = [0, 2, 0], sizes = [2, 1, 256], strides = [1, 1, 1]} : vector<2x4x256xf32> to vector<2x1x256xf32>
    %197 = vector.shape_cast %196 : vector<2x1x256xf32> to vector<2x256xf32>
    %c8 = arith.constant 8 : index
    %198 = memref.load %arg12[%c8] : memref<64xf32, #tpu.memory_space<smem>>
    %199 = vector.broadcast %198 : f32 to vector<2x256xf32>
    %200 = arith.mulf %197, %199 : vector<2x256xf32>
    %201 = arith.addf %183, %200 : vector<2x256xf32>
    %c24 = arith.constant 24 : index
    %202 = memref.load %arg12[%c24] : memref<64xf32, #tpu.memory_space<smem>>
    %203 = vector.broadcast %202 : f32 to vector<2x256xf32>
    %204 = arith.mulf %197, %203 : vector<2x256xf32>
    %205 = arith.addf %187, %204 : vector<2x256xf32>
    %c40 = arith.constant 40 : index
    %206 = memref.load %arg12[%c40] : memref<64xf32, #tpu.memory_space<smem>>
    %207 = vector.broadcast %206 : f32 to vector<2x256xf32>
    %208 = arith.mulf %197, %207 : vector<2x256xf32>
    %209 = arith.addf %191, %208 : vector<2x256xf32>
    %c56 = arith.constant 56 : index
    %210 = memref.load %arg12[%c56] : memref<64xf32, #tpu.memory_space<smem>>
    %211 = vector.broadcast %210 : f32 to vector<2x256xf32>
    %212 = arith.mulf %197, %211 : vector<2x256xf32>
    %213 = arith.addf %195, %212 : vector<2x256xf32>
    %c255_i32_47 = arith.constant 255 : i32
    %214 = tpu.dynamic_rotate %197 by %c255_i32_47 dim 1 : vector<2x256xf32>, i32 -> vector<2x256xf32>
    %c9 = arith.constant 9 : index
    %215 = memref.load %arg12[%c9] : memref<64xf32, #tpu.memory_space<smem>>
    %216 = vector.broadcast %215 : f32 to vector<2x256xf32>
    %217 = arith.mulf %214, %216 : vector<2x256xf32>
    %218 = arith.addf %201, %217 : vector<2x256xf32>
    %c25 = arith.constant 25 : index
    %219 = memref.load %arg12[%c25] : memref<64xf32, #tpu.memory_space<smem>>
    %220 = vector.broadcast %219 : f32 to vector<2x256xf32>
    %221 = arith.mulf %214, %220 : vector<2x256xf32>
    %222 = arith.addf %205, %221 : vector<2x256xf32>
    %c41 = arith.constant 41 : index
    %223 = memref.load %arg12[%c41] : memref<64xf32, #tpu.memory_space<smem>>
    %224 = vector.broadcast %223 : f32 to vector<2x256xf32>
    %225 = arith.mulf %214, %224 : vector<2x256xf32>
    %226 = arith.addf %209, %225 : vector<2x256xf32>
    %c57 = arith.constant 57 : index
    %227 = memref.load %arg12[%c57] : memref<64xf32, #tpu.memory_space<smem>>
    %228 = vector.broadcast %227 : f32 to vector<2x256xf32>
    %229 = arith.mulf %214, %228 : vector<2x256xf32>
    %230 = arith.addf %213, %229 : vector<2x256xf32>
    %c240_i32_48 = arith.constant 240 : i32
    %231 = tpu.dynamic_rotate %197 by %c240_i32_48 dim 1 : vector<2x256xf32>, i32 -> vector<2x256xf32>
    %c10 = arith.constant 10 : index
    %232 = memref.load %arg12[%c10] : memref<64xf32, #tpu.memory_space<smem>>
    %233 = vector.broadcast %232 : f32 to vector<2x256xf32>
    %234 = arith.mulf %231, %233 : vector<2x256xf32>
    %235 = arith.addf %218, %234 : vector<2x256xf32>
    %c26 = arith.constant 26 : index
    %236 = memref.load %arg12[%c26] : memref<64xf32, #tpu.memory_space<smem>>
    %237 = vector.broadcast %236 : f32 to vector<2x256xf32>
    %238 = arith.mulf %231, %237 : vector<2x256xf32>
    %239 = arith.addf %222, %238 : vector<2x256xf32>
    %c42 = arith.constant 42 : index
    %240 = memref.load %arg12[%c42] : memref<64xf32, #tpu.memory_space<smem>>
    %241 = vector.broadcast %240 : f32 to vector<2x256xf32>
    %242 = arith.mulf %231, %241 : vector<2x256xf32>
    %243 = arith.addf %226, %242 : vector<2x256xf32>
    %c58 = arith.constant 58 : index
    %244 = memref.load %arg12[%c58] : memref<64xf32, #tpu.memory_space<smem>>
    %245 = vector.broadcast %244 : f32 to vector<2x256xf32>
    %246 = arith.mulf %231, %245 : vector<2x256xf32>
    %247 = arith.addf %230, %246 : vector<2x256xf32>
    %c239_i32_49 = arith.constant 239 : i32
    %248 = tpu.dynamic_rotate %197 by %c239_i32_49 dim 1 : vector<2x256xf32>, i32 -> vector<2x256xf32>
    %c11 = arith.constant 11 : index
    %249 = memref.load %arg12[%c11] : memref<64xf32, #tpu.memory_space<smem>>
    %250 = vector.broadcast %249 : f32 to vector<2x256xf32>
    %251 = arith.mulf %248, %250 : vector<2x256xf32>
    %252 = arith.addf %235, %251 : vector<2x256xf32>
    %c27 = arith.constant 27 : index
    %253 = memref.load %arg12[%c27] : memref<64xf32, #tpu.memory_space<smem>>
    %254 = vector.broadcast %253 : f32 to vector<2x256xf32>
    %255 = arith.mulf %248, %254 : vector<2x256xf32>
    %256 = arith.addf %239, %255 : vector<2x256xf32>
    %c43 = arith.constant 43 : index
    %257 = memref.load %arg12[%c43] : memref<64xf32, #tpu.memory_space<smem>>
    %258 = vector.broadcast %257 : f32 to vector<2x256xf32>
    %259 = arith.mulf %248, %258 : vector<2x256xf32>
    %260 = arith.addf %243, %259 : vector<2x256xf32>
    %c59 = arith.constant 59 : index
    %261 = memref.load %arg12[%c59] : memref<64xf32, #tpu.memory_space<smem>>
    %262 = vector.broadcast %261 : f32 to vector<2x256xf32>
    %263 = arith.mulf %248, %262 : vector<2x256xf32>
    %264 = arith.addf %247, %263 : vector<2x256xf32>
    %265 = vector.extract_strided_slice %41 {offsets = [0, 3, 0], sizes = [2, 1, 256], strides = [1, 1, 1]} : vector<2x4x256xf32> to vector<2x1x256xf32>
    %266 = vector.shape_cast %265 : vector<2x1x256xf32> to vector<2x256xf32>
    %c12 = arith.constant 12 : index
    %267 = memref.load %arg12[%c12] : memref<64xf32, #tpu.memory_space<smem>>
    %268 = vector.broadcast %267 : f32 to vector<2x256xf32>
    %269 = arith.mulf %266, %268 : vector<2x256xf32>
    %270 = arith.addf %252, %269 : vector<2x256xf32>
    %c28 = arith.constant 28 : index
    %271 = memref.load %arg12[%c28] : memref<64xf32, #tpu.memory_space<smem>>
    %272 = vector.broadcast %271 : f32 to vector<2x256xf32>
    %273 = arith.mulf %266, %272 : vector<2x256xf32>
    %274 = arith.addf %256, %273 : vector<2x256xf32>
    %c44 = arith.constant 44 : index
    %275 = memref.load %arg12[%c44] : memref<64xf32, #tpu.memory_space<smem>>
    %276 = vector.broadcast %275 : f32 to vector<2x256xf32>
    %277 = arith.mulf %266, %276 : vector<2x256xf32>
    %278 = arith.addf %260, %277 : vector<2x256xf32>
    %c60 = arith.constant 60 : index
    %279 = memref.load %arg12[%c60] : memref<64xf32, #tpu.memory_space<smem>>
    %280 = vector.broadcast %279 : f32 to vector<2x256xf32>
    %281 = arith.mulf %266, %280 : vector<2x256xf32>
    %282 = arith.addf %264, %281 : vector<2x256xf32>
    %c255_i32_50 = arith.constant 255 : i32
    %283 = tpu.dynamic_rotate %266 by %c255_i32_50 dim 1 : vector<2x256xf32>, i32 -> vector<2x256xf32>
    %c13 = arith.constant 13 : index
    %284 = memref.load %arg12[%c13] : memref<64xf32, #tpu.memory_space<smem>>
    %285 = vector.broadcast %284 : f32 to vector<2x256xf32>
    %286 = arith.mulf %283, %285 : vector<2x256xf32>
    %287 = arith.addf %270, %286 : vector<2x256xf32>
    %c29 = arith.constant 29 : index
    %288 = memref.load %arg12[%c29] : memref<64xf32, #tpu.memory_space<smem>>
    %289 = vector.broadcast %288 : f32 to vector<2x256xf32>
    %290 = arith.mulf %283, %289 : vector<2x256xf32>
    %291 = arith.addf %274, %290 : vector<2x256xf32>
    %c45 = arith.constant 45 : index
    %292 = memref.load %arg12[%c45] : memref<64xf32, #tpu.memory_space<smem>>
    %293 = vector.broadcast %292 : f32 to vector<2x256xf32>
    %294 = arith.mulf %283, %293 : vector<2x256xf32>
    %295 = arith.addf %278, %294 : vector<2x256xf32>
    %c61 = arith.constant 61 : index
    %296 = memref.load %arg12[%c61] : memref<64xf32, #tpu.memory_space<smem>>
    %297 = vector.broadcast %296 : f32 to vector<2x256xf32>
    %298 = arith.mulf %283, %297 : vector<2x256xf32>
    %299 = arith.addf %282, %298 : vector<2x256xf32>
    %c240_i32_51 = arith.constant 240 : i32
    %300 = tpu.dynamic_rotate %266 by %c240_i32_51 dim 1 : vector<2x256xf32>, i32 -> vector<2x256xf32>
    %c14 = arith.constant 14 : index
    %301 = memref.load %arg12[%c14] : memref<64xf32, #tpu.memory_space<smem>>
    %302 = vector.broadcast %301 : f32 to vector<2x256xf32>
    %303 = arith.mulf %300, %302 : vector<2x256xf32>
    %304 = arith.addf %287, %303 : vector<2x256xf32>
    %c30 = arith.constant 30 : index
    %305 = memref.load %arg12[%c30] : memref<64xf32, #tpu.memory_space<smem>>
    %306 = vector.broadcast %305 : f32 to vector<2x256xf32>
    %307 = arith.mulf %300, %306 : vector<2x256xf32>
    %308 = arith.addf %291, %307 : vector<2x256xf32>
    %c46 = arith.constant 46 : index
    %309 = memref.load %arg12[%c46] : memref<64xf32, #tpu.memory_space<smem>>
    %310 = vector.broadcast %309 : f32 to vector<2x256xf32>
    %311 = arith.mulf %300, %310 : vector<2x256xf32>
    %312 = arith.addf %295, %311 : vector<2x256xf32>
    %c62 = arith.constant 62 : index
    %313 = memref.load %arg12[%c62] : memref<64xf32, #tpu.memory_space<smem>>
    %314 = vector.broadcast %313 : f32 to vector<2x256xf32>
    %315 = arith.mulf %300, %314 : vector<2x256xf32>
    %316 = arith.addf %299, %315 : vector<2x256xf32>
    %c239_i32_52 = arith.constant 239 : i32
    %317 = tpu.dynamic_rotate %266 by %c239_i32_52 dim 1 : vector<2x256xf32>, i32 -> vector<2x256xf32>
    %c15 = arith.constant 15 : index
    %318 = memref.load %arg12[%c15] : memref<64xf32, #tpu.memory_space<smem>>
    %319 = vector.broadcast %318 : f32 to vector<2x256xf32>
    %320 = arith.mulf %317, %319 : vector<2x256xf32>
    %321 = arith.addf %304, %320 : vector<2x256xf32>
    %c31 = arith.constant 31 : index
    %322 = memref.load %arg12[%c31] : memref<64xf32, #tpu.memory_space<smem>>
    %323 = vector.broadcast %322 : f32 to vector<2x256xf32>
    %324 = arith.mulf %317, %323 : vector<2x256xf32>
    %325 = arith.addf %308, %324 : vector<2x256xf32>
    %c47 = arith.constant 47 : index
    %326 = memref.load %arg12[%c47] : memref<64xf32, #tpu.memory_space<smem>>
    %327 = vector.broadcast %326 : f32 to vector<2x256xf32>
    %328 = arith.mulf %317, %327 : vector<2x256xf32>
    %329 = arith.addf %312, %328 : vector<2x256xf32>
    %c63 = arith.constant 63 : index
    %330 = memref.load %arg12[%c63] : memref<64xf32, #tpu.memory_space<smem>>
    %331 = vector.broadcast %330 : f32 to vector<2x256xf32>
    %332 = arith.mulf %317, %331 : vector<2x256xf32>
    %333 = arith.addf %316, %332 : vector<2x256xf32>
    %c0_53 = arith.constant 0 : index
    %c0_54 = arith.constant 0 : index
    %334 = vector.load %arg15[%c0_53, %c0_54] : memref<4x256xf32, #tpu.memory_space<vmem>>, vector<4x256xf32>
    %cst_55 = arith.constant 0.000000e+00 : f32
    %335 = vector.broadcast %cst_55 : f32 to vector<2x256xf32>
    %336 = arith.maximumf %335, %321 : vector<2x256xf32>
    %c255_i32_56 = arith.constant 255 : i32
    %337 = tpu.dynamic_rotate %321 by %c255_i32_56 dim 1 : vector<2x256xf32>, i32 -> vector<2x256xf32>
    %338 = arith.maximumf %336, %337 : vector<2x256xf32>
    %c240_i32_57 = arith.constant 240 : i32
    %339 = tpu.dynamic_rotate %321 by %c240_i32_57 dim 1 : vector<2x256xf32>, i32 -> vector<2x256xf32>
    %340 = arith.maximumf %338, %339 : vector<2x256xf32>
    %c239_i32_58 = arith.constant 239 : i32
    %341 = tpu.dynamic_rotate %321 by %c239_i32_58 dim 1 : vector<2x256xf32>, i32 -> vector<2x256xf32>
    %342 = arith.maximumf %340, %341 : vector<2x256xf32>
    %343 = vector.extract_strided_slice %334 {offsets = [0, 0], sizes = [1, 256], strides = [1, 1]} : vector<4x256xf32> to vector<1x256xf32>
    %344 = vector.broadcast %343 : vector<1x256xf32> to vector<2x256xf32>
    %345 = arith.mulf %342, %344 : vector<2x256xf32>
    %cst_59 = arith.constant dense<0.000000e+00> : vector<2xf32>
    %346 = vector.multi_reduction <add>, %345, %cst_59 [1] : vector<2x256xf32> to vector<2xf32>
    %347 = vector.shape_cast %346 : vector<2xf32> to vector<2x1xf32>
    %348 = arith.addf %40, %347 : vector<2x1xf32>
    %cst_60 = arith.constant 0.000000e+00 : f32
    %349 = vector.broadcast %cst_60 : f32 to vector<2x256xf32>
    %350 = arith.maximumf %349, %325 : vector<2x256xf32>
    %c255_i32_61 = arith.constant 255 : i32
    %351 = tpu.dynamic_rotate %325 by %c255_i32_61 dim 1 : vector<2x256xf32>, i32 -> vector<2x256xf32>
    %352 = arith.maximumf %350, %351 : vector<2x256xf32>
    %c240_i32_62 = arith.constant 240 : i32
    %353 = tpu.dynamic_rotate %325 by %c240_i32_62 dim 1 : vector<2x256xf32>, i32 -> vector<2x256xf32>
    %354 = arith.maximumf %352, %353 : vector<2x256xf32>
    %c239_i32_63 = arith.constant 239 : i32
    %355 = tpu.dynamic_rotate %325 by %c239_i32_63 dim 1 : vector<2x256xf32>, i32 -> vector<2x256xf32>
    %356 = arith.maximumf %354, %355 : vector<2x256xf32>
    %357 = vector.extract_strided_slice %334 {offsets = [1, 0], sizes = [1, 256], strides = [1, 1]} : vector<4x256xf32> to vector<1x256xf32>
    %358 = vector.broadcast %357 : vector<1x256xf32> to vector<2x256xf32>
    %359 = arith.mulf %356, %358 : vector<2x256xf32>
    %cst_64 = arith.constant dense<0.000000e+00> : vector<2xf32>
    %360 = vector.multi_reduction <add>, %359, %cst_64 [1] : vector<2x256xf32> to vector<2xf32>
    %361 = vector.shape_cast %360 : vector<2xf32> to vector<2x1xf32>
    %362 = arith.addf %348, %361 : vector<2x1xf32>
    %cst_65 = arith.constant 0.000000e+00 : f32
    %363 = vector.broadcast %cst_65 : f32 to vector<2x256xf32>
    %364 = arith.maximumf %363, %329 : vector<2x256xf32>
    %c255_i32_66 = arith.constant 255 : i32
    %365 = tpu.dynamic_rotate %329 by %c255_i32_66 dim 1 : vector<2x256xf32>, i32 -> vector<2x256xf32>
    %366 = arith.maximumf %364, %365 : vector<2x256xf32>
    %c240_i32_67 = arith.constant 240 : i32
    %367 = tpu.dynamic_rotate %329 by %c240_i32_67 dim 1 : vector<2x256xf32>, i32 -> vector<2x256xf32>
    %368 = arith.maximumf %366, %367 : vector<2x256xf32>
    %c239_i32_68 = arith.constant 239 : i32
    %369 = tpu.dynamic_rotate %329 by %c239_i32_68 dim 1 : vector<2x256xf32>, i32 -> vector<2x256xf32>
    %370 = arith.maximumf %368, %369 : vector<2x256xf32>
    %371 = vector.extract_strided_slice %334 {offsets = [2, 0], sizes = [1, 256], strides = [1, 1]} : vector<4x256xf32> to vector<1x256xf32>
    %372 = vector.broadcast %371 : vector<1x256xf32> to vector<2x256xf32>
    %373 = arith.mulf %370, %372 : vector<2x256xf32>
    %cst_69 = arith.constant dense<0.000000e+00> : vector<2xf32>
    %374 = vector.multi_reduction <add>, %373, %cst_69 [1] : vector<2x256xf32> to vector<2xf32>
    %375 = vector.shape_cast %374 : vector<2xf32> to vector<2x1xf32>
    %376 = arith.addf %362, %375 : vector<2x1xf32>
    %cst_70 = arith.constant 0.000000e+00 : f32
    %377 = vector.broadcast %cst_70 : f32 to vector<2x256xf32>
    %378 = arith.maximumf %377, %333 : vector<2x256xf32>
    %c255_i32_71 = arith.constant 255 : i32
    %379 = tpu.dynamic_rotate %333 by %c255_i32_71 dim 1 : vector<2x256xf32>, i32 -> vector<2x256xf32>
    %380 = arith.maximumf %378, %379 : vector<2x256xf32>
    %c240_i32_72 = arith.constant 240 : i32
    %381 = tpu.dynamic_rotate %333 by %c240_i32_72 dim 1 : vector<2x256xf32>, i32 -> vector<2x256xf32>
    %382 = arith.maximumf %380, %381 : vector<2x256xf32>
    %c239_i32_73 = arith.constant 239 : i32
    %383 = tpu.dynamic_rotate %333 by %c239_i32_73 dim 1 : vector<2x256xf32>, i32 -> vector<2x256xf32>
    %384 = arith.maximumf %382, %383 : vector<2x256xf32>
    %385 = vector.extract_strided_slice %334 {offsets = [3, 0], sizes = [1, 256], strides = [1, 1]} : vector<4x256xf32> to vector<1x256xf32>
    %386 = vector.broadcast %385 : vector<1x256xf32> to vector<2x256xf32>
    %387 = arith.mulf %384, %386 : vector<2x256xf32>
    %cst_74 = arith.constant dense<0.000000e+00> : vector<2xf32>
    %388 = vector.multi_reduction <add>, %387, %cst_74 [1] : vector<2x256xf32> to vector<2xf32>
    %389 = vector.shape_cast %388 : vector<2xf32> to vector<2x1xf32>
    %390 = arith.addf %376, %389 : vector<2x1xf32>
    %c0_75 = arith.constant 0 : index
    %391 = memref.load %arg17[%c0_75] : memref<1xf32, #tpu.memory_space<smem>>
    %392 = vector.broadcast %391 : f32 to vector<2x1xf32>
    %393 = arith.addf %390, %392 : vector<2x1xf32>
    %c0_76 = arith.constant 0 : index
    %c0_77 = arith.constant 0 : index
    %394 = vector.load %arg18[%c0_76, %c0_77] : memref<2x1xf32, #tpu.memory_space<vmem>>, vector<2x1xf32>
    tpu.vector_store %arg18[%c0_76, %c0_77], %393 {strides = array<i32>} : memref<2x1xf32, #tpu.memory_space<vmem>>, vector<2x1xf32>,
    return
  }
  func.func @transform_0(%arg0: i32) -> (i32, i32) {
    %c0_i32 = arith.constant 0 : i32
    %c0_i32_0 = arith.constant 0 : i32
    return %arg0, %c0_i32 : i32, i32
  }
  func.func @transform_1(%arg0: i32) -> (i32, i32, i32) {
    %c0_i32 = arith.constant 0 : i32
    %c0_i32_0 = arith.constant 0 : i32
    %c0_i32_1 = arith.constant 0 : i32
    return %arg0, %c0_i32, %c0_i32_0 : i32, i32, i32
  }
  func.func @transform_2(%arg0: i32) -> (i32, i32) {
    %c0_i32 = arith.constant 0 : i32
    %c0_i32_0 = arith.constant 0 : i32
    return %arg0, %c0_i32 : i32, i32
  }
  func.func @transform_3(%arg0: i32) -> (i32, i32) {
    %c0_i32 = arith.constant 0 : i32
    %c0_i32_0 = arith.constant 0 : i32
    %c0_i32_1 = arith.constant 0 : i32
    return %c0_i32, %c0_i32_0 : i32, i32
  }
  func.func @transform_4(%arg0: i32) -> (i32, i32) {
    %c0_i32 = arith.constant 0 : i32
    %c0_i32_0 = arith.constant 0 : i32
    %c0_i32_1 = arith.constant 0 : i32
    return %c0_i32, %c0_i32_0 : i32, i32
  }
  func.func @transform_5(%arg0: i32) -> (i32, i32) {
    %c0_i32 = arith.constant 0 : i32
    %c0_i32_0 = arith.constant 0 : i32
    %c0_i32_1 = arith.constant 0 : i32
    return %c0_i32, %c0_i32_0 : i32, i32
  }
  func.func @transform_6(%arg0: i32) -> (i32, i32) {
    %c0_i32 = arith.constant 0 : i32
    %c0_i32_0 = arith.constant 0 : i32
    %c0_i32_1 = arith.constant 0 : i32
    return %c0_i32, %c0_i32_0 : i32, i32
  }
  func.func @transform_7(%arg0: i32) -> (i32, i32) {
    %c0_i32 = arith.constant 0 : i32
    %c0_i32_0 = arith.constant 0 : i32
    %c0_i32_1 = arith.constant 0 : i32
    return %c0_i32, %c0_i32_0 : i32, i32
  }
  func.func @transform_8(%arg0: i32) -> (i32, i32) {
    %c0_i32 = arith.constant 0 : i32
    %c0_i32_0 = arith.constant 0 : i32
    %c0_i32_1 = arith.constant 0 : i32
    return %c0_i32, %c0_i32_0 : i32, i32
  }
  func.func @transform_9(%arg0: i32) -> (i32, i32) {
    %c0_i32 = arith.constant 0 : i32
    %c0_i32_0 = arith.constant 0 : i32
    %c0_i32_1 = arith.constant 0 : i32
    return %c0_i32, %c0_i32_0 : i32, i32
  }
  func.func @transform_10(%arg0: i32) -> (i32, i32) {
    %c0_i32 = arith.constant 0 : i32
    %c0_i32_0 = arith.constant 0 : i32
    %c0_i32_1 = arith.constant 0 : i32
    return %c0_i32, %c0_i32_0 : i32, i32
  }
  func.func @transform_11(%arg0: i32) -> i32 {
    %c0_i32 = arith.constant 0 : i32
    %c0_i32_0 = arith.constant 0 : i32
    return %c0_i32 : i32
  }
  func.func @transform_12(%arg0: i32) -> i32 {
    %c0_i32 = arith.constant 0 : i32
    %c0_i32_0 = arith.constant 0 : i32
    return %c0_i32 : i32
  }
  func.func @transform_13(%arg0: i32) -> (i32, i32) {
    %c0_i32 = arith.constant 0 : i32
    %c0_i32_0 = arith.constant 0 : i32
    %c0_i32_1 = arith.constant 0 : i32
    return %c0_i32, %c0_i32_0 : i32, i32
  }
  func.func @transform_14(%arg0: i32) -> (i32, i32) {
    %c0_i32 = arith.constant 0 : i32
    %c0_i32_0 = arith.constant 0 : i32
    %c0_i32_1 = arith.constant 0 : i32
    return %c0_i32, %c0_i32_0 : i32, i32
  }
  func.func @transform_15(%arg0: i32) -> (i32, i32) {
    %c0_i32 = arith.constant 0 : i32
    %c0_i32_0 = arith.constant 0 : i32
    %c0_i32_1 = arith.constant 0 : i32
    return %c0_i32, %c0_i32_0 : i32, i32
  }
  func.func @transform_16(%arg0: i32) -> i32 {
    %c0_i32 = arith.constant 0 : i32
    %c0_i32_0 = arith.constant 0 : i32
    return %c0_i32 : i32
  }
  func.func @transform_17(%arg0: i32) -> (i32, i32) {
    %c0_i32 = arith.constant 0 : i32
    %c0_i32_0 = arith.constant 0 : i32
    return %arg0, %c0_i32 : i32, i32
  }
}

</mosaic_0001>

<llo_original>
// kernel: critic_forward.1
$region0: #{critic_forward.1}
  #allocation0 [shape = 'u32[]', space=smem, size = 0x4, offset = 0x4, fixed_abs, tag = 'smem constant byte address 0x4 - core index']
  #allocation1 [shape = 'u32[144,128]{1,0:T(1,128)}', space=vmem, size = 0x12000, scoped, tag = 'internal scratch']
  #allocation2 [shape = 'f32[1]{0:T(128)S(6)}', space=smem, size = 0x200, scoped, tag = 'scoped memory for critic_forward.1']
  %s0 = inlined_call_operand.vmem [shape: f32[2,8], index: 0, kind: input, shape index: {}]
  %s1 = inlined_call_operand.vmem [shape: f32[2,4,256], index: 1, kind: input, shape index: {}]
  %s2 = inlined_call_operand.vmem [shape: f32[2,4], index: 2, kind: input, shape index: {}]
  %s3 = inlined_call_operand.vmem [shape: f32[8,32], index: 3, kind: input, shape index: {}]
  %s4 = inlined_call_operand.vmem [shape: f32[1,32], index: 4, kind: input, shape index: {}]
  %s5 = inlined_call_operand.vmem [shape: f32[32,64], index: 5, kind: input, shape index: {}]
  %s6 = inlined_call_operand.vmem [shape: f32[1,64], index: 6, kind: input, shape index: {}]
  %s7 = inlined_call_operand.vmem [shape: f32[64,128], index: 7, kind: input, shape index: {}]
  %s8 = inlined_call_operand.vmem [shape: f32[1,128], index: 8, kind: input, shape index: {}]
  %s9 = inlined_call_operand.vmem [shape: f32[4,4], index: 9, kind: input, shape index: {}]
  %s10 = inlined_call_operand.vmem [shape: f32[1,4], index: 10, kind: input, shape index: {}]
  %s11 = inlined_call_operand.vmem [shape: f32[64], index: 11, kind: input, shape index: {}]
  %s12 = inlined_call_operand.vmem [shape: f32[4], index: 12, kind: input, shape index: {}]
  %s13 = inlined_call_operand.vmem [shape: f32[1,128], index: 13, kind: input, shape index: {}]
  %s14 = inlined_call_operand.vmem [shape: f32[4,256], index: 14, kind: input, shape index: {}]
  %s15 = inlined_call_operand.vmem [shape: f32[1,4], index: 15, kind: input, shape index: {}]
  %s16 = inlined_call_operand.<no memory space> [shape: f32[1], index: 16, kind: input, shape index: {}]
  %s17 = inlined_call_operand.vmem [shape: f32[2,1], index: 17, kind: output, shape index: {}]
  %s18 = sld [smem:[#allocation0]]
  $region86: #{critic_forward.1} parent=0
    _
  %s20 = ssub.s32 1, %s18
  %s21 = scalar_select 0, %s20, %s18
  %22 = sst [smem:[#allocation2]] %s16
  $region1: #{critic_forward.1} parent=0
    #allocation3 [shape = 'u8[512]{0}', space=smem, size = 0x200, scoped, tag = 'input window, operand 11, single buffered']
    #allocation4 [shape = 's32[1]{0}', space=sflag, size = 0x4, scoped, tag = 'scoped memory for critic_forward.1']
    #allocation5 [shape = 'u8[512]{0}', space=smem, size = 0x200, scoped, tag = 'input window, operand 12, single buffered']
    #allocation6 [shape = 's32[1]{0}', space=sflag, size = 0x4, scoped, tag = 'scoped memory for critic_forward.1']
    %23 = vsyncpa [#allocation4], 0
    %24 = vsyncpa [#allocation6], 0
    // Predicated region
    $region2: #{critic_forward.1} parent=1 // pred_check
      _
    $region3: #{critic_forward.1} parent=1 // pred_check_branch
      %26 = sbr.rel (0) target = $region5
    $region4: #{critic_forward.1} parent=1 // pred_region
      _
    $region5: #{critic_forward.1} parent=1 // pred_fallthru
      _
    // Predicated region
    $region6: #{critic_forward.1} parent=1 // pred_check
      _
    $region7: #{critic_forward.1} parent=1 // pred_check_branch
      %28 = sbr.rel (0) target = $region9
    $region8: #{critic_forward.1} parent=1 // pred_region
      _
    $region9: #{critic_forward.1} parent=1 // pred_fallthru
      _
    // Predicated region
    $region10: #{critic_forward.1} parent=1 // pred_check
      _
    $region11: #{critic_forward.1} parent=1 // pred_check_branch
      %30 = sbr.rel (0) target = $region13
    $region12: #{critic_forward.1} parent=1 // pred_region
      _
    $region13: #{critic_forward.1} parent=1 // pred_fallthru
      _
    // Predicated region
    $region14: #{critic_forward.1} parent=1 // pred_check
      _
    $region15: #{critic_forward.1} parent=1 // pred_check_branch
      %32 = sbr.rel (0) target = $region17
    $region16: #{critic_forward.1} parent=1 // pred_region
      _
    $region17: #{critic_forward.1} parent=1 // pred_fallthru
      _
    // Predicated region
    $region18: #{critic_forward.1} parent=1 // pred_check
      _
    $region19: #{critic_forward.1} parent=1 // pred_check_branch
      %34 = sbr.rel (0) target = $region21
    $region20: #{critic_forward.1} parent=1 // pred_region
      _
    $region21: #{critic_forward.1} parent=1 // pred_fallthru
      _
    // Predicated region
    $region22: #{critic_forward.1} parent=1 // pred_check
      _
    $region23: #{critic_forward.1} parent=1 // pred_check_branch
      %36 = sbr.rel (0) target = $region25
    $region24: #{critic_forward.1} parent=1 // pred_region
      _
    $region25: #{critic_forward.1} parent=1 // pred_fallthru
      _
    // Predicated region
    $region26: #{critic_forward.1} parent=1 // pred_check
      _
    $region27: #{critic_forward.1} parent=1 // pred_check_branch
      %38 = sbr.rel (0) target = $region29
    $region28: #{critic_forward.1} parent=1 // pred_region
      _
    $region29: #{critic_forward.1} parent=1 // pred_fallthru
      _
    // Predicated region
    $region30: #{critic_forward.1} parent=1 // pred_check
      _
    $region31: #{critic_forward.1} parent=1 // pred_check_branch
      %40 = sbr.rel (0) target = $region33
    $region32: #{critic_forward.1} parent=1 // pred_region
      _
    $region33: #{critic_forward.1} parent=1 // pred_fallthru
      _
    // Predicated region
    $region34: #{critic_forward.1} parent=1 // pred_check
      _
    $region35: #{critic_forward.1} parent=1 // pred_check_branch
      %42 = sbr.rel (0) target = $region37
    $region36: #{critic_forward.1} parent=1 // pred_region
      _
    $region37: #{critic_forward.1} parent=1 // pred_fallthru
      _
    // Predicated region
    $region38: #{critic_forward.1} parent=1 // pred_check
      _
    $region39: #{critic_forward.1} parent=1 // pred_check_branch
      %44 = sbr.rel (0) target = $region41
    $region40: #{critic_forward.1} parent=1 // pred_region
      _
    $region41: #{critic_forward.1} parent=1 // pred_fallthru
      _
    // Predicated region
    $region42: #{critic_forward.1} parent=1 // pred_check
      _
    $region43: #{critic_forward.1} parent=1 // pred_check_branch
      %46 = sbr.rel (0) target = $region45
    $region44: #{critic_forward.1} parent=1 // pred_region
      _
    $region45: #{critic_forward.1} parent=1 // pred_fallthru
      _
    // Predicated region
    $region46: #{critic_forward.1} parent=1 // pred_check
      _
    $region47: #{critic_forward.1} parent=1 // pred_check_branch
      %48 = sbr.rel (0) target = $region49
    $region48: #{critic_forward.1} parent=1 // pred_region
      %s50 = ssub.s32 16, 16
      %51 = vsyncadd [#allocation4], %s50
      %s53 = sshll.u32 %s11, 4
      %s54 = int_to_ptr.vmem [resolvable:$true] %s53
      %56 = dma.vmem_to_smem %s54, 16, [#allocation3], [#allocation4]
    $region49: #{critic_forward.1} parent=1 // pred_fallthru
      _
    // Predicated region
    $region50: #{critic_forward.1} parent=1 // pred_check
      _
    $region51: #{critic_forward.1} parent=1 // pred_check_branch
      %58 = sbr.rel (0) target = $region53
    $region52: #{critic_forward.1} parent=1 // pred_region
      %s60 = ssub.s32 16, 16
      %61 = vsyncadd [#allocation6], %s60
      %s63 = sshll.u32 %s12, 4
      %s64 = int_to_ptr.vmem [resolvable:$true] %s63
      %66 = dma.vmem_to_smem %s64, 16, [#allocation5], [#allocation6]
    $region53: #{critic_forward.1} parent=1 // pred_fallthru
      _
    // Predicated region
    $region54: #{critic_forward.1} parent=1 // pred_check
      _
    $region55: #{critic_forward.1} parent=1 // pred_check_branch
      %68 = sbr.rel (0) target = $region57
    $region56: #{critic_forward.1} parent=1 // pred_region
      _
    $region57: #{critic_forward.1} parent=1 // pred_fallthru
      _
    // Predicated region
    $region58: #{critic_forward.1} parent=1 // pred_check
      _
    $region59: #{critic_forward.1} parent=1 // pred_check_branch
      %70 = sbr.rel (0) target = $region61
    $region60: #{critic_forward.1} parent=1 // pred_region
      _
    $region61: #{critic_forward.1} parent=1 // pred_fallthru
      _
    // Predicated region
    $region62: #{critic_forward.1} parent=1 // pred_check
      _
    $region63: #{critic_forward.1} parent=1 // pred_check_branch
      %72 = sbr.rel (0) target = $region65
    $region64: #{critic_forward.1} parent=1 // pred_region
      _
    $region65: #{critic_forward.1} parent=1 // pred_fallthru
      _
    // Predicated region
    $region66: #{critic_forward.1} parent=1 // pred_check
      _
    $region67: #{critic_forward.1} parent=1 // pred_check_branch
      %74 = sbr.rel (0) target = $region69
    $region68: #{critic_forward.1} parent=1 // pred_region
      _
    $region69: #{critic_forward.1} parent=1 // pred_fallthru
      _
    // Predicated region
    $region70: #{critic_forward.1} parent=1 // pred_check
      _
    $region71: #{critic_forward.1} parent=1 // pred_check_branch
      %76 = sbr.rel (0) target = $region73
    $region72: #{critic_forward.1} parent=1 // pred_region
      %77 = dma.done [#allocation4], 16
    $region73: #{critic_forward.1} parent=1 // pred_fallthru
      _
    // Predicated region
    $region74: #{critic_forward.1} parent=1 // pred_check
      _
    $region75: #{critic_forward.1} parent=1 // pred_check_branch
      %79 = sbr.rel (0) target = $region77
    $region76: #{critic_forward.1} parent=1 // pred_region
      %80 = dma.done [#allocation6], 16
    $region77: #{critic_forward.1} parent=1 // pred_fallthru
      _
    %81 = sfence
    %v82 = vld [vmem:[%s0] sm:$0x3]
    %v83 = vld [vmem:[%s3] sm:$0xff]
    %v84 = vld [vmem:[%s4] sm:$0x1]
    %v86 = vlaneseq
    %v87 = vshrl.u32 %v86, 7
    %v88 = vsub.s32 0, %v87
    %v89 = vrot.slane %v84, %v88
    %vm91 = vcmask 64512
    %v93 = vsel %vm91, %v82, 0
    %95 = vmatprep.subr.mxu0 0.0
    %96 = vmatpush1.msra.mxu0 0.0
    %97 = vmatprep.subr.mxu0 0.0
    %98 = vmatpush1.msra.mxu0 0.0
    %99 = vmatprep.subr.mxu0 0.0
    %100 = vmatpush1.msra.mxu0 0.0
    %101 = vmatprep.subr.mxu0 0.0
    %102 = vmatpush1.msra.mxu0 0.0
    %103 = vmatprep.subr.mxu0 0.0
    %104 = vmatpush1.msra.mxu0 0.0
    %105 = vmatprep.subr.mxu0 0.0
    %106 = vmatpush1.msra.mxu0 0.0
    %107 = vmatprep.subr.mxu0 0.0
    %108 = vmatpush1.msra.mxu0 0.0
    %109 = vmatprep.subr.mxu0 0.0
    %110 = vmatpush1.msra.mxu0 0.0
    %111 = vmatprep.subr.mxu0 0.0
    %112 = vmatpush1.msra.mxu0 0.0
    %113 = vmatprep.subr.mxu0 0.0
    %114 = vmatpush1.msra.mxu0 0.0
    %115 = vmatprep.subr.mxu0 0.0
    %116 = vmatpush1.msra.mxu0 0.0
    %117 = vmatprep.subr.mxu0 0.0
    %118 = vmatpush1.msra.mxu0 0.0
    %119 = vmatprep.subr.mxu0 0.0
    %120 = vmatpush1.msra.mxu0 0.0
    %121 = vmatprep.subr.mxu0 0.0
    %122 = vmatpush1.msra.mxu0 0.0
    %123 = vmatprep.subr.mxu0 0.0
    %124 = vmatpush1.msra.mxu0 0.0
    %125 = vmatprep.subr.mxu0 0.0
    %126 = vmatpush1.msra.mxu0 %v83
    %127 = vmatprep.subr.mxu0 0.0
    %128 = vmatpush2.msra.mxu0 0.0
    %129 = vmatprep.subr.mxu0 0.0
    %130 = vmatpush2.msra.mxu0 0.0
    %131 = vmatprep.subr.mxu0 0.0
    %132 = vmatpush2.msra.mxu0 0.0
    %133 = vmatprep.subr.mxu0 0.0
    %134 = vmatpush2.msra.mxu0 0.0
    %135 = vmatprep.subr.mxu0 0.0
    %136 = vmatpush2.msra.mxu0 0.0
    %137 = vmatprep.subr.mxu0 0.0
    %138 = vmatpush2.msra.mxu0 0.0
    %139 = vmatprep.subr.mxu0 0.0
    %140 = vmatpush2.msra.mxu0 0.0
    %141 = vmatprep.subr.mxu0 0.0
    %142 = vmatpush2.msra.mxu0 0.0
    %143 = vmatprep.subr.mxu0 0.0
    %144 = vmatpush2.msra.mxu0 0.0
    %145 = vmatprep.subr.mxu0 0.0
    %146 = vmatpush2.msra.mxu0 0.0
    %147 = vmatprep.subr.mxu0 0.0
    %148 = vmatpush2.msra.mxu0 0.0
    %149 = vmatprep.subr.mxu0 0.0
    %150 = vmatpush2.msra.mxu0 0.0
    %151 = vmatprep.subr.mxu0 0.0
    %152 = vmatpush2.msra.mxu0 0.0
    %153 = vmatprep.subr.mxu0 0.0
    %154 = vmatpush2.msra.mxu0 0.0
    %155 = vmatprep.subr.mxu0 0.0
    %156 = vmatpush2.msra.mxu0 0.0
    %157 = vmatprep.subr.mxu0 0.0
    %158 = vmatpush2.msra.mxu0 0.0
    %159 = vmatprep.mubr.f32.mxu0 0.0
    %160 = vmatmul.mubr.f32.gmra.mxu0 %v93
    %v161 = vpop.f32.mrf.mxu0
    %v162 = vadd.f32 %v89, %v161
    %v163 = vpop.f32.mrf.mxu0
    %164 = vdwg.mxu0
    %v165 = vmax.f32 %v162, 0.0
    %v166 = vld [vmem:[%s5] sm:$0xff]
    %v167 = vld [vmem:[%s5 + $0x8] sm:$0xff]
    %v168 = vld [vmem:[%s5 + $0x10] sm:$0xff]
    %v169 = vld [vmem:[%s5 + $0x18] sm:$0xff]
    %v170 = vld [vmem:[%s6] sm:$0x1]
    %v172 = vlaneseq
    %v173 = vshrl.u32 %v172, 7
    %v174 = vsub.s32 0, %v173
    %v175 = vrot.slane %v170, %v174
    %vm177 = vcmask 261120
    %v179 = vsel %vm177, %v165, 0
    %181 = vmatprep.subr.mxu0 0.0
    %182 = vmatpush1.msra.mxu0 0.0
    %183 = vmatprep.subr.mxu0 0.0
    %184 = vmatpush1.msra.mxu0 0.0
    %185 = vmatprep.subr.mxu0 0.0
    %186 = vmatpush1.msra.mxu0 0.0
    %187 = vmatprep.subr.mxu0 0.0
    %188 = vmatpush1.msra.mxu0 0.0
    %189 = vmatprep.subr.mxu0 0.0
    %190 = vmatpush1.msra.mxu0 0.0
    %191 = vmatprep.subr.mxu0 0.0
    %192 = vmatpush1.msra.mxu0 0.0
    %193 = vmatprep.subr.mxu0 0.0
    %194 = vmatpush1.msra.mxu0 0.0
    %195 = vmatprep.subr.mxu0 0.0
    %196 = vmatpush1.msra.mxu0 0.0
    %197 = vmatprep.subr.mxu0 0.0
    %198 = vmatpush1.msra.mxu0 0.0
    %199 = vmatprep.subr.mxu0 0.0
    %200 = vmatpush1.msra.mxu0 0.0
    %201 = vmatprep.subr.mxu0 0.0
    %202 = vmatpush1.msra.mxu0 0.0
    %203 = vmatprep.subr.mxu0 0.0
    %204 = vmatpush1.msra.mxu0 0.0
    %205 = vmatprep.subr.mxu0 0.0
    %206 = vmatpush1.msra.mxu0 %v169
    %207 = vmatprep.subr.mxu0 0.0
    %208 = vmatpush1.msra.mxu0 %v168
    %209 = vmatprep.subr.mxu0 0.0
    %210 = vmatpush1.msra.mxu0 %v167
    %211 = vmatprep.subr.mxu0 0.0
    %212 = vmatpush1.msra.mxu0 %v166
    %213 = vmatprep.subr.mxu0 0.0
    %214 = vmatpush2.msra.mxu0 0.0
    %215 = vmatprep.subr.mxu0 0.0
    %216 = vmatpush2.msra.mxu0 0.0
    %217 = vmatprep.subr.mxu0 0.0
    %218 = vmatpush2.msra.mxu0 0.0
    %219 = vmatprep.subr.mxu0 0.0
    %220 = vmatpush2.msra.mxu0 0.0
    %221 = vmatprep.subr.mxu0 0.0
    %222 = vmatpush2.msra.mxu0 0.0
    %223 = vmatprep.subr.mxu0 0.0
    %224 = vmatpush2.msra.mxu0 0.0
    %225 = vmatprep.subr.mxu0 0.0
    %226 = vmatpush2.msra.mxu0 0.0
    %227 = vmatprep.subr.mxu0 0.0
    %228 = vmatpush2.msra.mxu0 0.0
    %229 = vmatprep.subr.mxu0 0.0
    %230 = vmatpush2.msra.mxu0 0.0
    %231 = vmatprep.subr.mxu0 0.0
    %232 = vmatpush2.msra.mxu0 0.0
    %233 = vmatprep.subr.mxu0 0.0
    %234 = vmatpush2.msra.mxu0 0.0
    %235 = vmatprep.subr.mxu0 0.0
    %236 = vmatpush2.msra.mxu0 0.0
    %237 = vmatprep.subr.mxu0 0.0
    %238 = vmatpush2.msra.mxu0 0.0
    %239 = vmatprep.subr.mxu0 0.0
    %240 = vmatpush2.msra.mxu0 0.0
    %241 = vmatprep.subr.mxu0 0.0
    %242 = vmatpush2.msra.mxu0 0.0
    %243 = vmatprep.subr.mxu0 0.0
    %244 = vmatpush2.msra.mxu0 0.0
    %245 = vmatprep.mubr.f32.mxu0 0.0
    %246 = vmatmul.mubr.f32.gmra.mxu0 %v179
    %v247 = vpop.f32.mrf.mxu0
    %v248 = vadd.f32 %v175, %v247
    %v249 = vpop.f32.mrf.mxu0
    %250 = vdwg.mxu0
    %v251 = vmax.f32 %v248, 0.0
    %v252 = vld [vmem:[%s7] sm:$0xff]
    %v253 = vld [vmem:[%s7 + $0x8] sm:$0xff]
    %v254 = vld [vmem:[%s7 + $0x10] sm:$0xff]
    %v255 = vld [vmem:[%s7 + $0x18] sm:$0xff]
    %v256 = vld [vmem:[%s7 + $0x20] sm:$0xff]
    %v257 = vld [vmem:[%s7 + $0x28] sm:$0xff]
    %v258 = vld [vmem:[%s7 + $0x30] sm:$0xff]
    %v259 = vld [vmem:[%s7 + $0x38] sm:$0xff]
    %v260 = vld [vmem:[%s8] sm:$0x1]
    %v262 = vlaneseq
    %v263 = vshrl.u32 %v262, 7
    %v264 = vsub.s32 0, %v263
    %v265 = vrot.slane %v260, %v264
    %vm267 = vcmask 523264
    %v269 = vsel %vm267, %v251, 0
    %271 = vmatprep.subr.mxu0 0.0
    %272 = vmatpush1.msra.mxu0 0.0
    %273 = vmatprep.subr.mxu0 0.0
    %274 = vmatpush1.msra.mxu0 0.0
    %275 = vmatprep.subr.mxu0 0.0
    %276 = vmatpush1.msra.mxu0 0.0
    %277 = vmatprep.subr.mxu0 0.0
    %278 = vmatpush1.msra.mxu0 0.0
    %279 = vmatprep.subr.mxu0 0.0
    %280 = vmatpush1.msra.mxu0 0.0
    %281 = vmatprep.subr.mxu0 0.0
    %282 = vmatpush1.msra.mxu0 0.0
    %283 = vmatprep.subr.mxu0 0.0
    %284 = vmatpush1.msra.mxu0 0.0
    %285 = vmatprep.subr.mxu0 0.0
    %286 = vmatpush1.msra.mxu0 0.0
    %287 = vmatprep.subr.mxu0 0.0
    %288 = vmatpush1.msra.mxu0 %v259
    %289 = vmatprep.subr.mxu0 0.0
    %290 = vmatpush1.msra.mxu0 %v258
    %291 = vmatprep.subr.mxu0 0.0
    %292 = vmatpush1.msra.mxu0 %v257
    %293 = vmatprep.subr.mxu0 0.0
    %294 = vmatpush1.msra.mxu0 %v256
    %295 = vmatprep.subr.mxu0 0.0
    %296 = vmatpush1.msra.mxu0 %v255
    %297 = vmatprep.subr.mxu0 0.0
    %298 = vmatpush1.msra.mxu0 %v254
    %299 = vmatprep.subr.mxu0 0.0
    %300 = vmatpush1.msra.mxu0 %v253
    %301 = vmatprep.subr.mxu0 0.0
    %302 = vmatpush1.msra.mxu0 %v252
    %303 = vmatprep.subr.mxu0 0.0
    %304 = vmatpush2.msra.mxu0 0.0
    %305 = vmatprep.subr.mxu0 0.0
    %306 = vmatpush2.msra.mxu0 0.0
    %307 = vmatprep.subr.mxu0 0.0
    %308 = vmatpush2.msra.mxu0 0.0
    %309 = vmatprep.subr.mxu0 0.0
    %310 = vmatpush2.msra.mxu0 0.0
    %311 = vmatprep.subr.mxu0 0.0
    %312 = vmatpush2.msra.mxu0 0.0
    %313 = vmatprep.subr.mxu0 0.0
    %314 = vmatpush2.msra.mxu0 0.0
    %315 = vmatprep.subr.mxu0 0.0
    %316 = vmatpush2.msra.mxu0 0.0
    %317 = vmatprep.subr.mxu0 0.0
    %318 = vmatpush2.msra.mxu0 0.0
    %319 = vmatprep.subr.mxu0 0.0
    %320 = vmatpush2.msra.mxu0 0.0
    %321 = vmatprep.subr.mxu0 0.0
    %322 = vmatpush2.msra.mxu0 0.0
    %323 = vmatprep.subr.mxu0 0.0
    %324 = vmatpush2.msra.mxu0 0.0
    %325 = vmatprep.subr.mxu0 0.0
    %326 = vmatpush2.msra.mxu0 0.0
    %327 = vmatprep.subr.mxu0 0.0
    %328 = vmatpush2.msra.mxu0 0.0
    %329 = vmatprep.subr.mxu0 0.0
    %330 = vmatpush2.msra.mxu0 0.0
    %331 = vmatprep.subr.mxu0 0.0
    %332 = vmatpush2.msra.mxu0 0.0
    %333 = vmatprep.subr.mxu0 0.0
    %334 = vmatpush2.msra.mxu0 0.0
    %335 = vmatprep.mubr.f32.mxu0 0.0
    %336 = vmatmul.mubr.f32.gmra.mxu0 %v269
    %v337 = vpop.f32.mrf.mxu0
    %v338 = vadd.f32 %v265, %v337
    %v339 = vpop.f32.mrf.mxu0
    %340 = vdwg.mxu0
    %v341 = vmax.f32 %v338, 0.0
    %v342 = vld [vmem:[%s13] sm:$0x1]
    %v344 = vlaneseq
    %v345 = vshrl.u32 %v344, 7
    %v346 = vsub.s32 0, %v345
    %v347 = vrot.slane %v342, %v346
    %v349 = vmul.f32 %v341, %v347
    %vm350 = vcmask 1041408
    %v351 = vsel %vm350, %v349, 0.0
    %352 = vadd.xlane.f32.xlu0 %v351
    %v353 = vpop.xlane.xlu0 %352
    %v354 = vld [vmem:[%s2] sm:$0x3]
    %v355 = vld [vmem:[%s9] sm:$0xf]
    %v356 = vld [vmem:[%s10] sm:$0x1]
    %v358 = vlaneseq
    %v359 = vshrl.u32 %v358, 7
    %v360 = vsub.s32 0, %v359
    %v361 = vrot.slane %v356, %v360
    %vm363 = vcmask 31744
    %v365 = vsel %vm363, %v354, 0
    %vm367 = vcmask 1043456
    %v369 = vsel %vm367, %v355, 0
    %371 = vmatprep.subr.mxu0 0.0
    %372 = vmatpush1.msra.mxu0 0.0
    %373 = vmatprep.subr.mxu0 0.0
    %374 = vmatpush1.msra.mxu0 0.0
    %375 = vmatprep.subr.mxu0 0.0
    %376 = vmatpush1.msra.mxu0 0.0
    %377 = vmatprep.subr.mxu0 0.0
    %378 = vmatpush1.msra.mxu0 0.0
    %379 = vmatprep.subr.mxu0 0.0
    %380 = vmatpush1.msra.mxu0 0.0
    %381 = vmatprep.subr.mxu0 0.0
    %382 = vmatpush1.msra.mxu0 0.0
    %383 = vmatprep.subr.mxu0 0.0
    %384 = vmatpush1.msra.mxu0 0.0
    %385 = vmatprep.subr.mxu0 0.0
    %386 = vmatpush1.msra.mxu0 0.0
    %387 = vmatprep.subr.mxu0 0.0
    %388 = vmatpush1.msra.mxu0 0.0
    %389 = vmatprep.subr.mxu0 0.0
    %390 = vmatpush1.msra.mxu0 0.0
    %391 = vmatprep.subr.mxu0 0.0
    %392 = vmatpush1.msra.mxu0 0.0
    %393 = vmatprep.subr.mxu0 0.0
    %394 = vmatpush1.msra.mxu0 0.0
    %395 = vmatprep.subr.mxu0 0.0
    %396 = vmatpush1.msra.mxu0 0.0
    %397 = vmatprep.subr.mxu0 0.0
    %398 = vmatpush1.msra.mxu0 0.0
    %399 = vmatprep.subr.mxu0 0.0
    %400 = vmatpush1.msra.mxu0 0.0
    %401 = vmatprep.subr.mxu0 0.0
    %402 = vmatpush1.msra.mxu0 %v369
    %403 = vmatprep.subr.mxu0 0.0
    %404 = vmatpush2.msra.mxu0 0.0
    %405 = vmatprep.subr.mxu0 0.0
    %406 = vmatpush2.msra.mxu0 0.0
    %407 = vmatprep.subr.mxu0 0.0
    %408 = vmatpush2.msra.mxu0 0.0
    %409 = vmatprep.subr.mxu0 0.0
    %410 = vmatpush2.msra.mxu0 0.0
    %411 = vmatprep.subr.mxu0 0.0
    %412 = vmatpush2.msra.mxu0 0.0
    %413 = vmatprep.subr.mxu0 0.0
    %414 = vmatpush2.msra.mxu0 0.0
    %415 = vmatprep.subr.mxu0 0.0
    %416 = vmatpush2.msra.mxu0 0.0
    %417 = vmatprep.subr.mxu0 0.0
    %418 = vmatpush2.msra.mxu0 0.0
    %419 = vmatprep.subr.mxu0 0.0
    %420 = vmatpush2.msra.mxu0 0.0
    %421 = vmatprep.subr.mxu0 0.0
    %422 = vmatpush2.msra.mxu0 0.0
    %423 = vmatprep.subr.mxu0 0.0
    %424 = vmatpush2.msra.mxu0 0.0
    %425 = vmatprep.subr.mxu0 0.0
    %426 = vmatpush2.msra.mxu0 0.0
    %427 = vmatprep.subr.mxu0 0.0
    %428 = vmatpush2.msra.mxu0 0.0
    %429 = vmatprep.subr.mxu0 0.0
    %430 = vmatpush2.msra.mxu0 0.0
    %431 = vmatprep.subr.mxu0 0.0
    %432 = vmatpush2.msra.mxu0 0.0
    %433 = vmatprep.subr.mxu0 0.0
    %434 = vmatpush2.msra.mxu0 0.0
    %435 = vmatprep.mubr.f32.mxu0 0.0
    %436 = vmatmul.mubr.f32.gmra.mxu0 %v365
    %v437 = vpop.f32.mrf.mxu0
    %v438 = vadd.f32 %v361, %v437
    %v439 = vpop.f32.mrf.mxu0
    %440 = vdwg.mxu0
    %v441 = vmax.f32 %v438, 0.0
    %v442 = vld [vmem:[%s15] sm:$0x1]
    %v444 = vlaneseq
    %v445 = vshrl.u32 %v444, 7
    %v446 = vsub.s32 0, %v445
    %v447 = vrot.slane %v442, %v446
    %v449 = vmul.f32 %v441, %v447
    %vm450 = vcmask 25600
    %v451 = vsel %vm450, %v449, 0.0
    %452 = vadd.xlane.f32.xlu0 %v451
    %v453 = vpop.xlane.xlu0 %452
    %v454 = vadd.f32 %v353, %v453
    %v455 = vld [vmem:[%s1] sm:$0xff]
    %v456 = vld [vmem:[%s1 + $0x8] sm:$0xff]
    %s457 = sld [smem:[#allocation5]]
    %v458 = vstv %s457
    %v459 = vadd.f32 %v458, 0.0
    %s460 = sld [smem:[#allocation5 + $0x1]]
    %v461 = vstv %s460
    %v462 = vadd.f32 %v461, 0.0
    %s463 = sld [smem:[#allocation5 + $0x2]]
    %v464 = vstv %s463
    %v465 = vadd.f32 %v464, 0.0
    %s466 = sld [smem:[#allocation5 + $0x3]]
    %v467 = vstv %s466
    %v468 = vadd.f32 %v467, 0.0
    %s469 = sld [smem:[#allocation3]]
    %v470 = vstv %s469
    %v471 = vmul.f32 %v455, %v470
    %v472 = vmul.f32 %v456, %v470
    %v473 = vadd.f32 %v459, %v471
    %v474 = vadd.f32 %v459, %v472
    %s475 = sld [smem:[#allocation3 + $0x10]]
    %v476 = vstv %s475
    %v477 = vmul.f32 %v455, %v476
    %v478 = vmul.f32 %v456, %v476
    %v479 = vadd.f32 %v462, %v477
    %v480 = vadd.f32 %v462, %v478
    %s481 = sld [smem:[#allocation3 + $0x20]]
    %v482 = vstv %s481
    %v483 = vmul.f32 %v455, %v482
    %v484 = vmul.f32 %v456, %v482
    %v485 = vadd.f32 %v465, %v483
    %v486 = vadd.f32 %v465, %v484
    %s487 = sld [smem:[#allocation3 + $0x30]]
    %v488 = vstv %s487
    %v489 = vmul.f32 %v455, %v488
    %v490 = vmul.f32 %v456, %v488
    %v491 = vadd.f32 %v468, %v489
    %v492 = vadd.f32 %v468, %v490
    %v495 = vlaneseq
    %v496 = vshrl.u32 %v495, 7
    %v497 = vsub.s32 0, %v496
    %v498 = vrot.slane %v455, %v497
    %v499 = vlaneseq
    %v500 = vshrl.u32 %v499, 7
    %v501 = vsub.s32 4, %v500
    %v502 = vrot.slane %v455, %v501
    %v503 = vlaneseq
    %v504 = vshrl.u32 %v503, 7
    %v505 = vsub.s32 0, %v504
    %v506 = vrot.slane %v456, %v505
    %v507 = vlaneseq
    %v508 = vshrl.u32 %v507, 7
    %v509 = vsub.s32 4, %v508
    %v510 = vrot.slane %v456, %v509
    %vm511 = vcmask 1041409
    %v512 = vsel %vm511, %v506, %v498
    %v513 = vsel %vm511, %v510, %v502
    %516 = vrot.lane.b32.xlu0 %v512, 127
    %v517 = vpop.permute.xlu0 %516
    %518 = vrot.lane.b32.xlu0 %v513, 127
    %v519 = vpop.permute.xlu0 %518
    %v520 = vlaneseq
    %v521 = vand.u32 %v520, 127
    %vm522 = vcmp.lt.s32.totalorder %v521, 127
    %v523 = vsel %vm522, %v517, %v519
    %v524 = vsel %vm522, %v519, %v517
    %s525 = sld [smem:[#allocation3 + $0x1]]
    %v526 = vstv %s525
    %v527 = vmul.f32 %v523, %v526
    %v528 = vmul.f32 %v524, %v526
    %v531 = vcombine.low %v527, %v528
    %v532 = vrot.slane %v531, 1
    %v535 = vadd.f32 %v473, %v531
    %v536 = vadd.f32 %v474, %v532
    %s537 = sld [smem:[#allocation3 + $0x11]]
    %v538 = vstv %s537
    %v539 = vmul.f32 %v523, %v538
    %v540 = vmul.f32 %v524, %v538
    %v543 = vcombine.low %v539, %v540
    %v544 = vrot.slane %v543, 1
    %v547 = vadd.f32 %v479, %v543
    %v548 = vadd.f32 %v480, %v544
    %s549 = sld [smem:[#allocation3 + $0x21]]
    %v550 = vstv %s549
    %v551 = vmul.f32 %v523, %v550
    %v552 = vmul.f32 %v524, %v550
    %v555 = vcombine.low %v551, %v552
    %v556 = vrot.slane %v555, 1
    %v559 = vadd.f32 %v485, %v555
    %v560 = vadd.f32 %v486, %v556
    %s561 = sld [smem:[#allocation3 + $0x31]]
    %v562 = vstv %s561
    %v563 = vmul.f32 %v523, %v562
    %v564 = vmul.f32 %v524, %v562
    %v567 = vcombine.low %v563, %v564
    %v568 = vrot.slane %v567, 1
    %v571 = vadd.f32 %v491, %v567
    %v572 = vadd.f32 %v492, %v568
    %573 = vrot.lane.b32.xlu0 %v512, 112
    %v574 = vpop.permute.xlu0 %573
    %575 = vrot.lane.b32.xlu0 %v513, 112
    %v576 = vpop.permute.xlu0 %575
    %vm577 = vcmp.lt.s32.totalorder %v521, 112
    %v578 = vsel %vm577, %v574, %v576
    %v579 = vsel %vm577, %v576, %v574
    %s580 = sld [smem:[#allocation3 + $0x2]]
    %v581 = vstv %s580
    %v582 = vmul.f32 %v578, %v581
    %v583 = vmul.f32 %v579, %v581
    %v586 = vcombine.low %v582, %v583
    %v587 = vrot.slane %v586, 1
    %v590 = vadd.f32 %v535, %v586
    %v591 = vadd.f32 %v536, %v587
    %s592 = sld [smem:[#allocation3 + $0x12]]
    %v593 = vstv %s592
    %v594 = vmul.f32 %v578, %v593
    %v595 = vmul.f32 %v579, %v593
    %v598 = vcombine.low %v594, %v595
    %v599 = vrot.slane %v598, 1
    %v602 = vadd.f32 %v547, %v598
    %v603 = vadd.f32 %v548, %v599
    %s604 = sld [smem:[#allocation3 + $0x22]]
    %v605 = vstv %s604
    %v606 = vmul.f32 %v578, %v605
    %v607 = vmul.f32 %v579, %v605
    %v610 = vcombine.low %v606, %v607
    %v611 = vrot.slane %v610, 1
    %v614 = vadd.f32 %v559, %v610
    %v615 = vadd.f32 %v560, %v611
    %s616 = sld [smem:[#allocation3 + $0x32]]
    %v617 = vstv %s616
    %v618 = vmul.f32 %v578, %v617
    %v619 = vmul.f32 %v579, %v617
    %v622 = vcombine.low %v618, %v619
    %v623 = vrot.slane %v622, 1
    %v626 = vadd.f32 %v571, %v622
    %v627 = vadd.f32 %v572, %v623
    %628 = vrot.lane.b32.xlu0 %v512, 111
    %v629 = vpop.permute.xlu0 %628
    %630 = vrot.lane.b32.xlu0 %v513, 111
    %v631 = vpop.permute.xlu0 %630
    %vm632 = vcmp.lt.s32.totalorder %v521, 111
    %v633 = vsel %vm632, %v629, %v631
    %v634 = vsel %vm632, %v631, %v629
    %s635 = sld [smem:[#allocation3 + $0x3]]
    %v636 = vstv %s635
    %v637 = vmul.f32 %v633, %v636
    %v638 = vmul.f32 %v634, %v636
    %v641 = vcombine.low %v637, %v638
    %v642 = vrot.slane %v641, 1
    %v645 = vadd.f32 %v590, %v641
    %v646 = vadd.f32 %v591, %v642
    %s647 = sld [smem:[#allocation3 + $0x13]]
    %v648 = vstv %s647
    %v649 = vmul.f32 %v633, %v648
    %v650 = vmul.f32 %v634, %v648
    %v653 = vcombine.low %v649, %v650
    %v654 = vrot.slane %v653, 1
    %v657 = vadd.f32 %v602, %v653
    %v658 = vadd.f32 %v603, %v654
    %s659 = sld [smem:[#allocation3 + $0x23]]
    %v660 = vstv %s659
    %v661 = vmul.f32 %v633, %v660
    %v662 = vmul.f32 %v634, %v660
    %v665 = vcombine.low %v661, %v662
    %v666 = vrot.slane %v665, 1
    %v669 = vadd.f32 %v614, %v665
    %v670 = vadd.f32 %v615, %v666
    %s671 = sld [smem:[#allocation3 + $0x33]]
    %v672 = vstv %s671
    %v673 = vmul.f32 %v633, %v672
    %v674 = vmul.f32 %v634, %v672
    %v677 = vcombine.low %v673, %v674
    %v678 = vrot.slane %v677, 1
    %v681 = vadd.f32 %v626, %v677
    %v682 = vadd.f32 %v627, %v678
    %s683 = sld [smem:[#allocation3 + $0x4]]
    %v684 = vstv %s683
    %v685 = vmul.f32 %v455, %v684
    %v686 = vmul.f32 %v456, %v684
    %v689 = vrot.slane %v685, 5
    %v690 = vrot.slane %v689, 4
    %v691 = vrot.slane %v686, 5
    %v692 = vrot.slane %v691, 4
    %v695 = vadd.f32 %v645, %v690
    %v696 = vadd.f32 %v646, %v692
    %s697 = sld [smem:[#allocation3 + $0x14]]
    %v698 = vstv %s697
    %v699 = vmul.f32 %v455, %v698
    %v700 = vmul.f32 %v456, %v698
    %v703 = vrot.slane %v699, 5
    %v704 = vrot.slane %v703, 4
    %v705 = vrot.slane %v700, 5
    %v706 = vrot.slane %v705, 4
    %v709 = vadd.f32 %v657, %v704
    %v710 = vadd.f32 %v658, %v706
    %s711 = sld [smem:[#allocation3 + $0x24]]
    %v712 = vstv %s711
    %v713 = vmul.f32 %v455, %v712
    %v714 = vmul.f32 %v456, %v712
    %v717 = vrot.slane %v713, 5
    %v718 = vrot.slane %v717, 4
    %v719 = vrot.slane %v714, 5
    %v720 = vrot.slane %v719, 4
    %v723 = vadd.f32 %v669, %v718
    %v724 = vadd.f32 %v670, %v720
    %s725 = sld [smem:[#allocation3 + $0x34]]
    %v726 = vstv %s725
    %v727 = vmul.f32 %v455, %v726
    %v728 = vmul.f32 %v456, %v726
    %v731 = vrot.slane %v727, 5
    %v732 = vrot.slane %v731, 4
    %v733 = vrot.slane %v728, 5
    %v734 = vrot.slane %v733, 4
    %v737 = vadd.f32 %v681, %v732
    %v738 = vadd.f32 %v682, %v734
    %v739 = vlaneseq
    %v740 = vshrl.u32 %v739, 7
    %v741 = vsub.s32 1, %v740
    %v742 = vrot.slane %v455, %v741
    %v743 = vlaneseq
    %v744 = vshrl.u32 %v743, 7
    %v745 = vsub.s32 5, %v744
    %v746 = vrot.slane %v455, %v745
    %v747 = vlaneseq
    %v748 = vshrl.u32 %v747, 7
    %v749 = vsub.s32 1, %v748
    %v750 = vrot.slane %v456, %v749
    %v751 = vlaneseq
    %v752 = vshrl.u32 %v751, 7
    %v753 = vsub.s32 5, %v752
    %v754 = vrot.slane %v456, %v753
    %v755 = vsel %vm511, %v750, %v742
    %v756 = vsel %vm511, %v754, %v746
    %759 = vrot.lane.b32.xlu0 %v755, 127
    %v760 = vpop.permute.xlu0 %759
    %761 = vrot.lane.b32.xlu0 %v756, 127
    %v762 = vpop.permute.xlu0 %761
    %v763 = vsel %vm522, %v760, %v762
    %v764 = vsel %vm522, %v762, %v760
    %s765 = sld [smem:[#allocation3 + $0x5]]
    %v766 = vstv %s765
    %v767 = vmul.f32 %v763, %v766
    %v768 = vmul.f32 %v764, %v766
    %v771 = vcombine.low %v767, %v768
    %v772 = vrot.slane %v771, 1
    %v775 = vadd.f32 %v695, %v771
    %v776 = vadd.f32 %v696, %v772
    %s777 = sld [smem:[#allocation3 + $0x15]]
    %v778 = vstv %s777
    %v779 = vmul.f32 %v763, %v778
    %v780 = vmul.f32 %v764, %v778
    %v783 = vcombine.low %v779, %v780
    %v784 = vrot.slane %v783, 1
    %v787 = vadd.f32 %v709, %v783
    %v788 = vadd.f32 %v710, %v784
    %s789 = sld [smem:[#allocation3 + $0x25]]
    %v790 = vstv %s789
    %v791 = vmul.f32 %v763, %v790
    %v792 = vmul.f32 %v764, %v790
    %v795 = vcombine.low %v791, %v792
    %v796 = vrot.slane %v795, 1
    %v799 = vadd.f32 %v723, %v795
    %v800 = vadd.f32 %v724, %v796
    %s801 = sld [smem:[#allocation3 + $0x35]]
    %v802 = vstv %s801
    %v803 = vmul.f32 %v763, %v802
    %v804 = vmul.f32 %v764, %v802
    %v807 = vcombine.low %v803, %v804
    %v808 = vrot.slane %v807, 1
    %v811 = vadd.f32 %v737, %v807
    %v812 = vadd.f32 %v738, %v808
    %813 = vrot.lane.b32.xlu0 %v755, 112
    %v814 = vpop.permute.xlu0 %813
    %815 = vrot.lane.b32.xlu0 %v756, 112
    %v816 = vpop.permute.xlu0 %815
    %v817 = vsel %vm577, %v814, %v816
    %v818 = vsel %vm577, %v816, %v814
    %s819 = sld [smem:[#allocation3 + $0x6]]
    %v820 = vstv %s819
    %v821 = vmul.f32 %v817, %v820
    %v822 = vmul.f32 %v818, %v820
    %v825 = vcombine.low %v821, %v822
    %v826 = vrot.slane %v825, 1
    %v829 = vadd.f32 %v775, %v825
    %v830 = vadd.f32 %v776, %v826
    %s831 = sld [smem:[#allocation3 + $0x16]]
    %v832 = vstv %s831
    %v833 = vmul.f32 %v817, %v832
    %v834 = vmul.f32 %v818, %v832
    %v837 = vcombine.low %v833, %v834
    %v838 = vrot.slane %v837, 1
    %v841 = vadd.f32 %v787, %v837
    %v842 = vadd.f32 %v788, %v838
    %s843 = sld [smem:[#allocation3 + $0x26]]
    %v844 = vstv %s843
    %v845 = vmul.f32 %v817, %v844
    %v846 = vmul.f32 %v818, %v844
    %v849 = vcombine.low %v845, %v846
    %v850 = vrot.slane %v849, 1
    %v853 = vadd.f32 %v799, %v849
    %v854 = vadd.f32 %v800, %v850
    %s855 = sld [smem:[#allocation3 + $0x36]]
    %v856 = vstv %s855
    %v857 = vmul.f32 %v817, %v856
    %v858 = vmul.f32 %v818, %v856
    %v861 = vcombine.low %v857, %v858
    %v862 = vrot.slane %v861, 1
    %v865 = vadd.f32 %v811, %v861
    %v866 = vadd.f32 %v812, %v862
    %867 = vrot.lane.b32.xlu0 %v755, 111
    %v868 = vpop.permute.xlu0 %867
    %869 = vrot.lane.b32.xlu0 %v756, 111
    %v870 = vpop.permute.xlu0 %869
    %v871 = vsel %vm632, %v868, %v870
    %v872 = vsel %vm632, %v870, %v868
    %s873 = sld [smem:[#allocation3 + $0x7]]
    %v874 = vstv %s873
    %v875 = vmul.f32 %v871, %v874
    %v876 = vmul.f32 %v872, %v874
    %v879 = vcombine.low %v875, %v876
    %v880 = vrot.slane %v879, 1
    %v883 = vadd.f32 %v829, %v879
    %v884 = vadd.f32 %v830, %v880
    %s885 = sld [smem:[#allocation3 + $0x17]]
    %v886 = vstv %s885
    %v887 = vmul.f32 %v871, %v886
    %v888 = vmul.f32 %v872, %v886
    %v891 = vcombine.low %v887, %v888
    %v892 = vrot.slane %v891, 1
    %v895 = vadd.f32 %v841, %v891
    %v896 = vadd.f32 %v842, %v892
    %s897 = sld [smem:[#allocation3 + $0x27]]
    %v898 = vstv %s897
    %v899 = vmul.f32 %v871, %v898
    %v900 = vmul.f32 %v872, %v898
    %v903 = vcombine.low %v899, %v900
    %v904 = vrot.slane %v903, 1
    %v907 = vadd.f32 %v853, %v903
    %v908 = vadd.f32 %v854, %v904
    %s909 = sld [smem:[#allocation3 + $0x37]]
    %v910 = vstv %s909
    %v911 = vmul.f32 %v871, %v910
    %v912 = vmul.f32 %v872, %v910
    %v915 = vcombine.low %v911, %v912
    %v916 = vrot.slane %v915, 1
    %v919 = vadd.f32 %v865, %v915
    %v920 = vadd.f32 %v866, %v916
    %s921 = sld [smem:[#allocation3 + $0x8]]
    %v922 = vstv %s921
    %v923 = vmul.f32 %v455, %v922
    %v924 = vmul.f32 %v456, %v922
    %v927 = vrot.slane %v923, 6
    %v928 = vrot.slane %v927, 4
    %v929 = vrot.slane %v924, 6
    %v930 = vrot.slane %v929, 4
    %v933 = vadd.f32 %v883, %v928
    %v934 = vadd.f32 %v884, %v930
    %s935 = sld [smem:[#allocation3 + $0x18]]
    %v936 = vstv %s935
    %v937 = vmul.f32 %v455, %v936
    %v938 = vmul.f32 %v456, %v936
    %v941 = vrot.slane %v937, 6
    %v942 = vrot.slane %v941, 4
    %v943 = vrot.slane %v938, 6
    %v944 = vrot.slane %v943, 4
    %v947 = vadd.f32 %v895, %v942
    %v948 = vadd.f32 %v896, %v944
    %s949 = sld [smem:[#allocation3 + $0x28]]
    %v950 = vstv %s949
    %v951 = vmul.f32 %v455, %v950
    %v952 = vmul.f32 %v456, %v950
    %v955 = vrot.slane %v951, 6
    %v956 = vrot.slane %v955, 4
    %v957 = vrot.slane %v952, 6
    %v958 = vrot.slane %v957, 4
    %v961 = vadd.f32 %v907, %v956
    %v962 = vadd.f32 %v908, %v958
    %s963 = sld [smem:[#allocation3 + $0x38]]
    %v964 = vstv %s963
    %v965 = vmul.f32 %v455, %v964
    %v966 = vmul.f32 %v456, %v964
    %v969 = vrot.slane %v965, 6
    %v970 = vrot.slane %v969, 4
    %v971 = vrot.slane %v966, 6
    %v972 = vrot.slane %v971, 4
    %v975 = vadd.f32 %v919, %v970
    %v976 = vadd.f32 %v920, %v972
    %v977 = vlaneseq
    %v978 = vshrl.u32 %v977, 7
    %v979 = vsub.s32 2, %v978
    %v980 = vrot.slane %v455, %v979
    %v981 = vlaneseq
    %v982 = vshrl.u32 %v981, 7
    %v983 = vsub.s32 6, %v982
    %v984 = vrot.slane %v455, %v983
    %v985 = vlaneseq
    %v986 = vshrl.u32 %v985, 7
    %v987 = vsub.s32 2, %v986
    %v988 = vrot.slane %v456, %v987
    %v989 = vlaneseq
    %v990 = vshrl.u32 %v989, 7
    %v991 = vsub.s32 6, %v990
    %v992 = vrot.slane %v456, %v991
    %v993 = vsel %vm511, %v988, %v980
    %v994 = vsel %vm511, %v992, %v984
    %997 = vrot.lane.b32.xlu0 %v993, 127
    %v998 = vpop.permute.xlu0 %997
    %999 = vrot.lane.b32.xlu0 %v994, 127
    %v1000 = vpop.permute.xlu0 %999
    %v1001 = vsel %vm522, %v998, %v1000
    %v1002 = vsel %vm522, %v1000, %v998
    %s1003 = sld [smem:[#allocation3 + $0x9]]
    %v1004 = vstv %s1003
    %v1005 = vmul.f32 %v1001, %v1004
    %v1006 = vmul.f32 %v1002, %v1004
    %v1009 = vcombine.low %v1005, %v1006
    %v1010 = vrot.slane %v1009, 1
    %v1013 = vadd.f32 %v933, %v1009
    %v1014 = vadd.f32 %v934, %v1010
    %s1015 = sld [smem:[#allocation3 + $0x19]]
    %v1016 = vstv %s1015
    %v1017 = vmul.f32 %v1001, %v1016
    %v1018 = vmul.f32 %v1002, %v1016
    %v1021 = vcombine.low %v1017, %v1018
    %v1022 = vrot.slane %v1021, 1
    %v1025 = vadd.f32 %v947, %v1021
    %v1026 = vadd.f32 %v948, %v1022
    %s1027 = sld [smem:[#allocation3 + $0x29]]
    %v1028 = vstv %s1027
    %v1029 = vmul.f32 %v1001, %v1028
    %v1030 = vmul.f32 %v1002, %v1028
    %v1033 = vcombine.low %v1029, %v1030
    %v1034 = vrot.slane %v1033, 1
    %v1037 = vadd.f32 %v961, %v1033
    %v1038 = vadd.f32 %v962, %v1034
    %s1039 = sld [smem:[#allocation3 + $0x39]]
    %v1040 = vstv %s1039
    %v1041 = vmul.f32 %v1001, %v1040
    %v1042 = vmul.f32 %v1002, %v1040
    %v1045 = vcombine.low %v1041, %v1042
    %v1046 = vrot.slane %v1045, 1
    %v1049 = vadd.f32 %v975, %v1045
    %v1050 = vadd.f32 %v976, %v1046
    %1051 = vrot.lane.b32.xlu0 %v993, 112
    %v1052 = vpop.permute.xlu0 %1051
    %1053 = vrot.lane.b32.xlu0 %v994, 112
    %v1054 = vpop.permute.xlu0 %1053
    %v1055 = vsel %vm577, %v1052, %v1054
    %v1056 = vsel %vm577, %v1054, %v1052
    %s1057 = sld [smem:[#allocation3 + $0xa]]
    %v1058 = vstv %s1057
    %v1059 = vmul.f32 %v1055, %v1058
    %v1060 = vmul.f32 %v1056, %v1058
    %v1063 = vcombine.low %v1059, %v1060
    %v1064 = vrot.slane %v1063, 1
    %v1067 = vadd.f32 %v1013, %v1063
    %v1068 = vadd.f32 %v1014, %v1064
    %s1069 = sld [smem:[#allocation3 + $0x1a]]
    %v1070 = vstv %s1069
    %v1071 = vmul.f32 %v1055, %v1070
    %v1072 = vmul.f32 %v1056, %v1070
    %v1075 = vcombine.low %v1071, %v1072
    %v1076 = vrot.slane %v1075, 1
    %v1079 = vadd.f32 %v1025, %v1075
    %v1080 = vadd.f32 %v1026, %v1076
    %s1081 = sld [smem:[#allocation3 + $0x2a]]
    %v1082 = vstv %s1081
    %v1083 = vmul.f32 %v1055, %v1082
    %v1084 = vmul.f32 %v1056, %v1082
    %v1087 = vcombine.low %v1083, %v1084
    %v1088 = vrot.slane %v1087, 1
    %v1091 = vadd.f32 %v1037, %v1087
    %v1092 = vadd.f32 %v1038, %v1088
    %s1093 = sld [smem:[#allocation3 + $0x3a]]
    %v1094 = vstv %s1093
    %v1095 = vmul.f32 %v1055, %v1094
    %v1096 = vmul.f32 %v1056, %v1094
    %v1099 = vcombine.low %v1095, %v1096
    %v1100 = vrot.slane %v1099, 1
    %v1103 = vadd.f32 %v1049, %v1099
    %v1104 = vadd.f32 %v1050, %v1100
    %1105 = vrot.lane.b32.xlu0 %v993, 111
    %v1106 = vpop.permute.xlu0 %1105
    %1107 = vrot.lane.b32.xlu0 %v994, 111
    %v1108 = vpop.permute.xlu0 %1107
    %v1109 = vsel %vm632, %v1106, %v1108
    %v1110 = vsel %vm632, %v1108, %v1106
    %s1111 = sld [smem:[#allocation3 + $0xb]]
    %v1112 = vstv %s1111
    %v1113 = vmul.f32 %v1109, %v1112
    %v1114 = vmul.f32 %v1110, %v1112
    %v1117 = vcombine.low %v1113, %v1114
    %v1118 = vrot.slane %v1117, 1
    %v1121 = vadd.f32 %v1067, %v1117
    %v1122 = vadd.f32 %v1068, %v1118
    %s1123 = sld [smem:[#allocation3 + $0x1b]]
    %v1124 = vstv %s1123
    %v1125 = vmul.f32 %v1109, %v1124
    %v1126 = vmul.f32 %v1110, %v1124
    %v1129 = vcombine.low %v1125, %v1126
    %v1130 = vrot.slane %v1129, 1
    %v1133 = vadd.f32 %v1079, %v1129
    %v1134 = vadd.f32 %v1080, %v1130
    %s1135 = sld [smem:[#allocation3 + $0x2b]]
    %v1136 = vstv %s1135
    %v1137 = vmul.f32 %v1109, %v1136
    %v1138 = vmul.f32 %v1110, %v1136
    %v1141 = vcombine.low %v1137, %v1138
    %v1142 = vrot.slane %v1141, 1
    %v1145 = vadd.f32 %v1091, %v1141
    %v1146 = vadd.f32 %v1092, %v1142
    %s1147 = sld [smem:[#allocation3 + $0x3b]]
    %v1148 = vstv %s1147
    %v1149 = vmul.f32 %v1109, %v1148
    %v1150 = vmul.f32 %v1110, %v1148
    %v1153 = vcombine.low %v1149, %v1150
    %v1154 = vrot.slane %v1153, 1
    %v1157 = vadd.f32 %v1103, %v1153
    %v1158 = vadd.f32 %v1104, %v1154
    %s1159 = sld [smem:[#allocation3 + $0xc]]
    %v1160 = vstv %s1159
    %v1161 = vmul.f32 %v455, %v1160
    %v1162 = vmul.f32 %v456, %v1160
    %v1165 = vrot.slane %v1161, 7
    %v1166 = vrot.slane %v1165, 4
    %v1167 = vrot.slane %v1162, 7
    %v1168 = vrot.slane %v1167, 4
    %v1171 = vadd.f32 %v1121, %v1166
    %v1172 = vadd.f32 %v1122, %v1168
    %s1173 = sld [smem:[#allocation3 + $0x1c]]
    %v1174 = vstv %s1173
    %v1175 = vmul.f32 %v455, %v1174
    %v1176 = vmul.f32 %v456, %v1174
    %v1179 = vrot.slane %v1175, 7
    %v1180 = vrot.slane %v1179, 4
    %v1181 = vrot.slane %v1176, 7
    %v1182 = vrot.slane %v1181, 4
    %v1185 = vadd.f32 %v1133, %v1180
    %v1186 = vadd.f32 %v1134, %v1182
    %s1187 = sld [smem:[#allocation3 + $0x2c]]
    %v1188 = vstv %s1187
    %v1189 = vmul.f32 %v455, %v1188
    %v1190 = vmul.f32 %v456, %v1188
    %v1193 = vrot.slane %v1189, 7
    %v1194 = vrot.slane %v1193, 4
    %v1195 = vrot.slane %v1190, 7
    %v1196 = vrot.slane %v1195, 4
    %v1199 = vadd.f32 %v1145, %v1194
    %v1200 = vadd.f32 %v1146, %v1196
    %s1201 = sld [smem:[#allocation3 + $0x3c]]
    %v1202 = vstv %s1201
    %v1203 = vmul.f32 %v455, %v1202
    %v1204 = vmul.f32 %v456, %v1202
    %v1207 = vrot.slane %v1203, 7
    %v1208 = vrot.slane %v1207, 4
    %v1209 = vrot.slane %v1204, 7
    %v1210 = vrot.slane %v1209, 4
    %v1213 = vadd.f32 %v1157, %v1208
    %v1214 = vadd.f32 %v1158, %v1210
    %v1215 = vlaneseq
    %v1216 = vshrl.u32 %v1215, 7
    %v1217 = vsub.s32 3, %v1216
    %v1218 = vrot.slane %v455, %v1217
    %v1219 = vlaneseq
    %v1220 = vshrl.u32 %v1219, 7
    %v1221 = vsub.s32 7, %v1220
    %v1222 = vrot.slane %v455, %v1221
    %v1223 = vlaneseq
    %v1224 = vshrl.u32 %v1223, 7
    %v1225 = vsub.s32 3, %v1224
    %v1226 = vrot.slane %v456, %v1225
    %v1227 = vlaneseq
    %v1228 = vshrl.u32 %v1227, 7
    %v1229 = vsub.s32 7, %v1228
    %v1230 = vrot.slane %v456, %v1229
    %v1231 = vsel %vm511, %v1226, %v1218
    %v1232 = vsel %vm511, %v1230, %v1222
    %1235 = vrot.lane.b32.xlu0 %v1231, 127
    %v1236 = vpop.permute.xlu0 %1235
    %1237 = vrot.lane.b32.xlu0 %v1232, 127
    %v1238 = vpop.permute.xlu0 %1237
    %v1239 = vsel %vm522, %v1236, %v1238
    %v1240 = vsel %vm522, %v1238, %v1236
    %s1241 = sld [smem:[#allocation3 + $0xd]]
    %v1242 = vstv %s1241
    %v1243 = vmul.f32 %v1239, %v1242
    %v1244 = vmul.f32 %v1240, %v1242
    %v1247 = vcombine.low %v1243, %v1244
    %v1248 = vrot.slane %v1247, 1
    %v1251 = vadd.f32 %v1171, %v1247
    %v1252 = vadd.f32 %v1172, %v1248
    %s1253 = sld [smem:[#allocation3 + $0x1d]]
    %v1254 = vstv %s1253
    %v1255 = vmul.f32 %v1239, %v1254
    %v1256 = vmul.f32 %v1240, %v1254
    %v1259 = vcombine.low %v1255, %v1256
    %v1260 = vrot.slane %v1259, 1
    %v1263 = vadd.f32 %v1185, %v1259
    %v1264 = vadd.f32 %v1186, %v1260
    %s1265 = sld [smem:[#allocation3 + $0x2d]]
    %v1266 = vstv %s1265
    %v1267 = vmul.f32 %v1239, %v1266
    %v1268 = vmul.f32 %v1240, %v1266
    %v1271 = vcombine.low %v1267, %v1268
    %v1272 = vrot.slane %v1271, 1
    %v1275 = vadd.f32 %v1199, %v1271
    %v1276 = vadd.f32 %v1200, %v1272
    %s1277 = sld [smem:[#allocation3 + $0x3d]]
    %v1278 = vstv %s1277
    %v1279 = vmul.f32 %v1239, %v1278
    %v1280 = vmul.f32 %v1240, %v1278
    %v1283 = vcombine.low %v1279, %v1280
    %v1284 = vrot.slane %v1283, 1
    %v1287 = vadd.f32 %v1213, %v1283
    %v1288 = vadd.f32 %v1214, %v1284
    %1289 = vrot.lane.b32.xlu0 %v1231, 112
    %v1290 = vpop.permute.xlu0 %1289
    %1291 = vrot.lane.b32.xlu0 %v1232, 112
    %v1292 = vpop.permute.xlu0 %1291
    %v1293 = vsel %vm577, %v1290, %v1292
    %v1294 = vsel %vm577, %v1292, %v1290
    %s1295 = sld [smem:[#allocation3 + $0xe]]
    %v1296 = vstv %s1295
    %v1297 = vmul.f32 %v1293, %v1296
    %v1298 = vmul.f32 %v1294, %v1296
    %v1301 = vcombine.low %v1297, %v1298
    %v1302 = vrot.slane %v1301, 1
    %v1305 = vadd.f32 %v1251, %v1301
    %v1306 = vadd.f32 %v1252, %v1302
    %s1307 = sld [smem:[#allocation3 + $0x1e]]
    %v1308 = vstv %s1307
    %v1309 = vmul.f32 %v1293, %v1308
    %v1310 = vmul.f32 %v1294, %v1308
    %v1313 = vcombine.low %v1309, %v1310
    %v1314 = vrot.slane %v1313, 1
    %v1317 = vadd.f32 %v1263, %v1313
    %v1318 = vadd.f32 %v1264, %v1314
    %s1319 = sld [smem:[#allocation3 + $0x2e]]
    %v1320 = vstv %s1319
    %v1321 = vmul.f32 %v1293, %v1320
    %v1322 = vmul.f32 %v1294, %v1320
    %v1325 = vcombine.low %v1321, %v1322
    %v1326 = vrot.slane %v1325, 1
    %v1329 = vadd.f32 %v1275, %v1325
    %v1330 = vadd.f32 %v1276, %v1326
    %s1331 = sld [smem:[#allocation3 + $0x3e]]
    %v1332 = vstv %s1331
    %v1333 = vmul.f32 %v1293, %v1332
    %v1334 = vmul.f32 %v1294, %v1332
    %v1337 = vcombine.low %v1333, %v1334
    %v1338 = vrot.slane %v1337, 1
    %v1341 = vadd.f32 %v1287, %v1337
    %v1342 = vadd.f32 %v1288, %v1338
    %1343 = vrot.lane.b32.xlu0 %v1231, 111
    %v1344 = vpop.permute.xlu0 %1343
    %1345 = vrot.lane.b32.xlu0 %v1232, 111
    %v1346 = vpop.permute.xlu0 %1345
    %v1347 = vsel %vm632, %v1344, %v1346
    %v1348 = vsel %vm632, %v1346, %v1344
    %s1349 = sld [smem:[#allocation3 + $0xf]]
    %v1350 = vstv %s1349
    %v1351 = vmul.f32 %v1347, %v1350
    %v1352 = vmul.f32 %v1348, %v1350
    %v1355 = vcombine.low %v1351, %v1352
    %v1356 = vrot.slane %v1355, 1
    %v1359 = vadd.f32 %v1305, %v1355
    %v1360 = vadd.f32 %v1306, %v1356
    %s1361 = sld [smem:[#allocation3 + $0x1f]]
    %v1362 = vstv %s1361
    %v1363 = vmul.f32 %v1347, %v1362
    %v1364 = vmul.f32 %v1348, %v1362
    %v1367 = vcombine.low %v1363, %v1364
    %v1368 = vrot.slane %v1367, 1
    %v1371 = vadd.f32 %v1317, %v1367
    %v1372 = vadd.f32 %v1318, %v1368
    %s1373 = sld [smem:[#allocation3 + $0x2f]]
    %v1374 = vstv %s1373
    %v1375 = vmul.f32 %v1347, %v1374
    %v1376 = vmul.f32 %v1348, %v1374
    %v1379 = vcombine.low %v1375, %v1376
    %v1380 = vrot.slane %v1379, 1
    %v1383 = vadd.f32 %v1329, %v1379
    %v1384 = vadd.f32 %v1330, %v1380
    %s1385 = sld [smem:[#allocation3 + $0x3f]]
    %v1386 = vstv %s1385
    %v1387 = vmul.f32 %v1347, %v1386
    %v1388 = vmul.f32 %v1348, %v1386
    %v1391 = vcombine.low %v1387, %v1388
    %v1392 = vrot.slane %v1391, 1
    %v1395 = vadd.f32 %v1341, %v1391
    %v1396 = vadd.f32 %v1342, %v1392
    %v1397 = vld [vmem:[%s14] sm:$0xff]
    %v1398 = vmax.f32 %v1359, 0.0
    %v1399 = vmax.f32 %v1360, 0.0
    %v1402 = vlaneseq
    %v1403 = vshrl.u32 %v1402, 7
    %v1404 = vsub.s32 0, %v1403
    %v1405 = vrot.slane %v1359, %v1404
    %v1406 = vlaneseq
    %v1407 = vshrl.u32 %v1406, 7
    %v1408 = vsub.s32 4, %v1407
    %v1409 = vrot.slane %v1359, %v1408
    %v1410 = vlaneseq
    %v1411 = vshrl.u32 %v1410, 7
    %v1412 = vsub.s32 0, %v1411
    %v1413 = vrot.slane %v1360, %v1412
    %v1414 = vlaneseq
    %v1415 = vshrl.u32 %v1414, 7
    %v1416 = vsub.s32 4, %v1415
    %v1417 = vrot.slane %v1360, %v1416
    %v1418 = vsel %vm511, %v1413, %v1405
    %v1419 = vsel %vm511, %v1417, %v1409
    %1422 = vrot.lane.b32.xlu0 %v1418, 127
    %v1423 = vpop.permute.xlu0 %1422
    %1424 = vrot.lane.b32.xlu0 %v1419, 127
    %v1425 = vpop.permute.xlu0 %1424
    %v1426 = vsel %vm522, %v1423, %v1425
    %v1427 = vsel %vm522, %v1425, %v1423
    %v1430 = vcombine.low %v1426, %v1427
    %v1431 = vrot.slane %v1430, 1
    %v1434 = vmax.f32 %v1398, %v1430
    %v1435 = vmax.f32 %v1399, %v1431
    %1436 = vrot.lane.b32.xlu0 %v1418, 112
    %v1437 = vpop.permute.xlu0 %1436
    %1438 = vrot.lane.b32.xlu0 %v1419, 112
    %v1439 = vpop.permute.xlu0 %1438
    %v1440 = vsel %vm577, %v1437, %v1439
    %v1441 = vsel %vm577, %v1439, %v1437
    %v1444 = vcombine.low %v1440, %v1441
    %v1445 = vrot.slane %v1444, 1
    %v1448 = vmax.f32 %v1434, %v1444
    %v1449 = vmax.f32 %v1435, %v1445
    %1450 = vrot.lane.b32.xlu0 %v1418, 111
    %v1451 = vpop.permute.xlu0 %1450
    %1452 = vrot.lane.b32.xlu0 %v1419, 111
    %v1453 = vpop.permute.xlu0 %1452
    %v1454 = vsel %vm632, %v1451, %v1453
    %v1455 = vsel %vm632, %v1453, %v1451
    %v1458 = vcombine.low %v1454, %v1455
    %v1459 = vrot.slane %v1458, 1
    %v1462 = vmax.f32 %v1448, %v1458
    %v1463 = vmax.f32 %v1449, %v1459
    %v1465 = vlaneseq
    %v1466 = vshrl.u32 %v1465, 7
    %v1467 = vsub.s32 0, %v1466
    %v1468 = vrot.slane %v1397, %v1467
    %v1469 = vlaneseq
    %v1470 = vshrl.u32 %v1469, 7
    %v1471 = vsub.s32 4, %v1470
    %v1472 = vrot.slane %v1397, %v1471
    %v1475 = vlaneseq
    %v1476 = vshrl.u32 %v1475, 7
    %v1477 = vsub.s32 0, %v1476
    %v1478 = vrot.slane %v1468, %v1477
    %v1479 = vlaneseq
    %v1480 = vshrl.u32 %v1479, 7
    %v1481 = vsub.s32 0, %v1480
    %v1482 = vrot.slane %v1472, %v1481
    %v1485 = vcombine.low %v1478, %v1482
    %v1486 = vrot.slane %v1485, 1
    %v1489 = vmul.f32 %v1462, %v1485
    %v1490 = vmul.f32 %v1463, %v1486
    %v1493 = vlaneseq
    %v1494 = vshrl.u32 %v1493, 7
    %v1495 = vsub.s32 0, %v1494
    %v1496 = vrot.slane %v1489, %v1495
    %v1497 = vlaneseq
    %v1498 = vshrl.u32 %v1497, 7
    %v1499 = vsub.s32 4, %v1498
    %v1500 = vrot.slane %v1489, %v1499
    %v1501 = vlaneseq
    %v1502 = vshrl.u32 %v1501, 7
    %v1503 = vsub.s32 0, %v1502
    %v1504 = vrot.slane %v1490, %v1503
    %v1505 = vlaneseq
    %v1506 = vshrl.u32 %v1505, 7
    %v1507 = vsub.s32 4, %v1506
    %v1508 = vrot.slane %v1490, %v1507
    %v1509 = vsel %vm511, %v1504, %v1496
    %v1510 = vsel %vm511, %v1508, %v1500
    %v1513 = vsel %vm350, %v1509, 0.0
    %v1514 = vsel %vm350, %v1510, 0.0
    %v1515 = vadd.f32 %v1513, %v1514
    %1516 = vadd.xlane.f32.xlu0 %v1515
    %v1517 = vpop.xlane.xlu0 %1516
    %v1518 = vadd.f32 %v454, %v1517
    %v1519 = vmax.f32 %v1371, 0.0
    %v1520 = vmax.f32 %v1372, 0.0
    %v1523 = vlaneseq
    %v1524 = vshrl.u32 %v1523, 7
    %v1525 = vsub.s32 0, %v1524
    %v1526 = vrot.slane %v1371, %v1525
    %v1527 = vlaneseq
    %v1528 = vshrl.u32 %v1527, 7
    %v1529 = vsub.s32 4, %v1528
    %v1530 = vrot.slane %v1371, %v1529
    %v1531 = vlaneseq
    %v1532 = vshrl.u32 %v1531, 7
    %v1533 = vsub.s32 0, %v1532
    %v1534 = vrot.slane %v1372, %v1533
    %v1535 = vlaneseq
    %v1536 = vshrl.u32 %v1535, 7
    %v1537 = vsub.s32 4, %v1536
    %v1538 = vrot.slane %v1372, %v1537
    %v1539 = vsel %vm511, %v1534, %v1526
    %v1540 = vsel %vm511, %v1538, %v1530
    %1543 = vrot.lane.b32.xlu0 %v1539, 127
    %v1544 = vpop.permute.xlu0 %1543
    %1545 = vrot.lane.b32.xlu0 %v1540, 127
    %v1546 = vpop.permute.xlu0 %1545
    %v1547 = vsel %vm522, %v1544, %v1546
    %v1548 = vsel %vm522, %v1546, %v1544
    %v1551 = vcombine.low %v1547, %v1548
    %v1552 = vrot.slane %v1551, 1
    %v1555 = vmax.f32 %v1519, %v1551
    %v1556 = vmax.f32 %v1520, %v1552
    %1557 = vrot.lane.b32.xlu0 %v1539, 112
    %v1558 = vpop.permute.xlu0 %1557
    %1559 = vrot.lane.b32.xlu0 %v1540, 112
    %v1560 = vpop.permute.xlu0 %1559
    %v1561 = vsel %vm577, %v1558, %v1560
    %v1562 = vsel %vm577, %v1560, %v1558
    %v1565 = vcombine.low %v1561, %v1562
    %v1566 = vrot.slane %v1565, 1
    %v1569 = vmax.f32 %v1555, %v1565
    %v1570 = vmax.f32 %v1556, %v1566
    %1571 = vrot.lane.b32.xlu0 %v1539, 111
    %v1572 = vpop.permute.xlu0 %1571
    %1573 = vrot.lane.b32.xlu0 %v1540, 111
    %v1574 = vpop.permute.xlu0 %1573
    %v1575 = vsel %vm632, %v1572, %v1574
    %v1576 = vsel %vm632, %v1574, %v1572
    %v1579 = vcombine.low %v1575, %v1576
    %v1580 = vrot.slane %v1579, 1
    %v1583 = vmax.f32 %v1569, %v1579
    %v1584 = vmax.f32 %v1570, %v1580
    %v1585 = vlaneseq
    %v1586 = vshrl.u32 %v1585, 7
    %v1587 = vsub.s32 1, %v1586
    %v1588 = vrot.slane %v1397, %v1587
    %v1589 = vlaneseq
    %v1590 = vshrl.u32 %v1589, 7
    %v1591 = vsub.s32 5, %v1590
    %v1592 = vrot.slane %v1397, %v1591
    %v1595 = vlaneseq
    %v1596 = vshrl.u32 %v1595, 7
    %v1597 = vsub.s32 1, %v1596
    %v1598 = vrot.slane %v1588, %v1597
    %v1599 = vlaneseq
    %v1600 = vshrl.u32 %v1599, 7
    %v1601 = vsub.s32 1, %v1600
    %v1602 = vrot.slane %v1592, %v1601
    %v1605 = vcombine.low %v1598, %v1602
    %v1606 = vrot.slane %v1605, 1
    %v1609 = vmul.f32 %v1583, %v1605
    %v1610 = vmul.f32 %v1584, %v1606
    %v1613 = vlaneseq
    %v1614 = vshrl.u32 %v1613, 7
    %v1615 = vsub.s32 0, %v1614
    %v1616 = vrot.slane %v1609, %v1615
    %v1617 = vlaneseq
    %v1618 = vshrl.u32 %v1617, 7
    %v1619 = vsub.s32 4, %v1618
    %v1620 = vrot.slane %v1609, %v1619
    %v1621 = vlaneseq
    %v1622 = vshrl.u32 %v1621, 7
    %v1623 = vsub.s32 0, %v1622
    %v1624 = vrot.slane %v1610, %v1623
    %v1625 = vlaneseq
    %v1626 = vshrl.u32 %v1625, 7
    %v1627 = vsub.s32 4, %v1626
    %v1628 = vrot.slane %v1610, %v1627
    %v1629 = vsel %vm511, %v1624, %v1616
    %v1630 = vsel %vm511, %v1628, %v1620
    %v1633 = vsel %vm350, %v1629, 0.0
    %v1634 = vsel %vm350, %v1630, 0.0
    %v1635 = vadd.f32 %v1633, %v1634
    %1636 = vadd.xlane.f32.xlu0 %v1635
    %v1637 = vpop.xlane.xlu0 %1636
    %v1638 = vadd.f32 %v1518, %v1637
    %v1639 = vmax.f32 %v1383, 0.0
    %v1640 = vmax.f32 %v1384, 0.0
    %v1643 = vlaneseq
    %v1644 = vshrl.u32 %v1643, 7
    %v1645 = vsub.s32 0, %v1644
    %v1646 = vrot.slane %v1383, %v1645
    %v1647 = vlaneseq
    %v1648 = vshrl.u32 %v1647, 7
    %v1649 = vsub.s32 4, %v1648
    %v1650 = vrot.slane %v1383, %v1649
    %v1651 = vlaneseq
    %v1652 = vshrl.u32 %v1651, 7
    %v1653 = vsub.s32 0, %v1652
    %v1654 = vrot.slane %v1384, %v1653
    %v1655 = vlaneseq
    %v1656 = vshrl.u32 %v1655, 7
    %v1657 = vsub.s32 4, %v1656
    %v1658 = vrot.slane %v1384, %v1657
    %v1659 = vsel %vm511, %v1654, %v1646
    %v1660 = vsel %vm511, %v1658, %v1650
    %1663 = vrot.lane.b32.xlu0 %v1659, 127
    %v1664 = vpop.permute.xlu0 %1663
    %1665 = vrot.lane.b32.xlu0 %v1660, 127
    %v1666 = vpop.permute.xlu0 %1665
    %v1667 = vsel %vm522, %v1664, %v1666
    %v1668 = vsel %vm522, %v1666, %v1664
    %v1671 = vcombine.low %v1667, %v1668
    %v1672 = vrot.slane %v1671, 1
    %v1675 = vmax.f32 %v1639, %v1671
    %v1676 = vmax.f32 %v1640, %v1672
    %1677 = vrot.lane.b32.xlu0 %v1659, 112
    %v1678 = vpop.permute.xlu0 %1677
    %1679 = vrot.lane.b32.xlu0 %v1660, 112
    %v1680 = vpop.permute.xlu0 %1679
    %v1681 = vsel %vm577, %v1678, %v1680
    %v1682 = vsel %vm577, %v1680, %v1678
    %v1685 = vcombine.low %v1681, %v1682
    %v1686 = vrot.slane %v1685, 1
    %v1689 = vmax.f32 %v1675, %v1685
    %v1690 = vmax.f32 %v1676, %v1686
    %1691 = vrot.lane.b32.xlu0 %v1659, 111
    %v1692 = vpop.permute.xlu0 %1691
    %1693 = vrot.lane.b32.xlu0 %v1660, 111
    %v1694 = vpop.permute.xlu0 %1693
    %v1695 = vsel %vm632, %v1692, %v1694
    %v1696 = vsel %vm632, %v1694, %v1692
    %v1699 = vcombine.low %v1695, %v1696
    %v1700 = vrot.slane %v1699, 1
    %v1703 = vmax.f32 %v1689, %v1699
    %v1704 = vmax.f32 %v1690, %v1700
    %v1705 = vlaneseq
    %v1706 = vshrl.u32 %v1705, 7
    %v1707 = vsub.s32 2, %v1706
    %v1708 = vrot.slane %v1397, %v1707
    %v1709 = vlaneseq
    %v1710 = vshrl.u32 %v1709, 7
    %v1711 = vsub.s32 6, %v1710
    %v1712 = vrot.slane %v1397, %v1711
    %v1715 = vlaneseq
    %v1716 = vshrl.u32 %v1715, 7
    %v1717 = vsub.s32 2, %v1716
    %v1718 = vrot.slane %v1708, %v1717
    %v1719 = vlaneseq
    %v1720 = vshrl.u32 %v1719, 7
    %v1721 = vsub.s32 2, %v1720
    %v1722 = vrot.slane %v1712, %v1721
    %v1725 = vcombine.low %v1718, %v1722
    %v1726 = vrot.slane %v1725, 1
    %v1729 = vmul.f32 %v1703, %v1725
    %v1730 = vmul.f32 %v1704, %v1726
    %v1733 = vlaneseq
    %v1734 = vshrl.u32 %v1733, 7
    %v1735 = vsub.s32 0, %v1734
    %v1736 = vrot.slane %v1729, %v1735
    %v1737 = vlaneseq
    %v1738 = vshrl.u32 %v1737, 7
    %v1739 = vsub.s32 4, %v1738
    %v1740 = vrot.slane %v1729, %v1739
    %v1741 = vlaneseq
    %v1742 = vshrl.u32 %v1741, 7
    %v1743 = vsub.s32 0, %v1742
    %v1744 = vrot.slane %v1730, %v1743
    %v1745 = vlaneseq
    %v1746 = vshrl.u32 %v1745, 7
    %v1747 = vsub.s32 4, %v1746
    %v1748 = vrot.slane %v1730, %v1747
    %v1749 = vsel %vm511, %v1744, %v1736
    %v1750 = vsel %vm511, %v1748, %v1740
    %v1753 = vsel %vm350, %v1749, 0.0
    %v1754 = vsel %vm350, %v1750, 0.0
    %v1755 = vadd.f32 %v1753, %v1754
    %1756 = vadd.xlane.f32.xlu0 %v1755
    %v1757 = vpop.xlane.xlu0 %1756
    %v1758 = vadd.f32 %v1638, %v1757
    %v1759 = vmax.f32 %v1395, 0.0
    %v1760 = vmax.f32 %v1396, 0.0
    %v1763 = vlaneseq
    %v1764 = vshrl.u32 %v1763, 7
    %v1765 = vsub.s32 0, %v1764
    %v1766 = vrot.slane %v1395, %v1765
    %v1767 = vlaneseq
    %v1768 = vshrl.u32 %v1767, 7
    %v1769 = vsub.s32 4, %v1768
    %v1770 = vrot.slane %v1395, %v1769
    %v1771 = vlaneseq
    %v1772 = vshrl.u32 %v1771, 7
    %v1773 = vsub.s32 0, %v1772
    %v1774 = vrot.slane %v1396, %v1773
    %v1775 = vlaneseq
    %v1776 = vshrl.u32 %v1775, 7
    %v1777 = vsub.s32 4, %v1776
    %v1778 = vrot.slane %v1396, %v1777
    %v1779 = vsel %vm511, %v1774, %v1766
    %v1780 = vsel %vm511, %v1778, %v1770
    %1783 = vrot.lane.b32.xlu0 %v1779, 127
    %v1784 = vpop.permute.xlu0 %1783
    %1785 = vrot.lane.b32.xlu0 %v1780, 127
    %v1786 = vpop.permute.xlu0 %1785
    %v1787 = vsel %vm522, %v1784, %v1786
    %v1788 = vsel %vm522, %v1786, %v1784
    %v1791 = vcombine.low %v1787, %v1788
    %v1792 = vrot.slane %v1791, 1
    %v1795 = vmax.f32 %v1759, %v1791
    %v1796 = vmax.f32 %v1760, %v1792
    %1797 = vrot.lane.b32.xlu0 %v1779, 112
    %v1798 = vpop.permute.xlu0 %1797
    %1799 = vrot.lane.b32.xlu0 %v1780, 112
    %v1800 = vpop.permute.xlu0 %1799
    %v1801 = vsel %vm577, %v1798, %v1800
    %v1802 = vsel %vm577, %v1800, %v1798
    %v1805 = vcombine.low %v1801, %v1802
    %v1806 = vrot.slane %v1805, 1
    %v1809 = vmax.f32 %v1795, %v1805
    %v1810 = vmax.f32 %v1796, %v1806
    %1811 = vrot.lane.b32.xlu0 %v1779, 111
    %v1812 = vpop.permute.xlu0 %1811
    %1813 = vrot.lane.b32.xlu0 %v1780, 111
    %v1814 = vpop.permute.xlu0 %1813
    %v1815 = vsel %vm632, %v1812, %v1814
    %v1816 = vsel %vm632, %v1814, %v1812
    %v1819 = vcombine.low %v1815, %v1816
    %v1820 = vrot.slane %v1819, 1
    %v1823 = vmax.f32 %v1809, %v1819
    %v1824 = vmax.f32 %v1810, %v1820
    %v1825 = vlaneseq
    %v1826 = vshrl.u32 %v1825, 7
    %v1827 = vsub.s32 3, %v1826
    %v1828 = vrot.slane %v1397, %v1827
    %v1829 = vlaneseq
    %v1830 = vshrl.u32 %v1829, 7
    %v1831 = vsub.s32 7, %v1830
    %v1832 = vrot.slane %v1397, %v1831
    %v1835 = vlaneseq
    %v1836 = vshrl.u32 %v1835, 7
    %v1837 = vsub.s32 3, %v1836
    %v1838 = vrot.slane %v1828, %v1837
    %v1839 = vlaneseq
    %v1840 = vshrl.u32 %v1839, 7
    %v1841 = vsub.s32 3, %v1840
    %v1842 = vrot.slane %v1832, %v1841
    %v1845 = vcombine.low %v1838, %v1842
    %v1846 = vrot.slane %v1845, 1
    %v1849 = vmul.f32 %v1823, %v1845
    %v1850 = vmul.f32 %v1824, %v1846
    %v1853 = vlaneseq
    %v1854 = vshrl.u32 %v1853, 7
    %v1855 = vsub.s32 0, %v1854
    %v1856 = vrot.slane %v1849, %v1855
    %v1857 = vlaneseq
    %v1858 = vshrl.u32 %v1857, 7
    %v1859 = vsub.s32 4, %v1858
    %v1860 = vrot.slane %v1849, %v1859
    %v1861 = vlaneseq
    %v1862 = vshrl.u32 %v1861, 7
    %v1863 = vsub.s32 0, %v1862
    %v1864 = vrot.slane %v1850, %v1863
    %v1865 = vlaneseq
    %v1866 = vshrl.u32 %v1865, 7
    %v1867 = vsub.s32 4, %v1866
    %v1868 = vrot.slane %v1850, %v1867
    %v1869 = vsel %vm511, %v1864, %v1856
    %v1870 = vsel %vm511, %v1868, %v1860
    %v1873 = vsel %vm350, %v1869, 0.0
    %v1874 = vsel %vm350, %v1870, 0.0
    %v1875 = vadd.f32 %v1873, %v1874
    %1876 = vadd.xlane.f32.xlu0 %v1875
    %v1877 = vpop.xlane.xlu0 %1876
    %v1878 = vadd.f32 %v1758, %v1877
    %s1879 = sld [smem:[#allocation2]]
    %v1880 = vstv %s1879
    %v1881 = vadd.f32 %v1878, %v1880
    %vm1882 = vcmask 1024
    %1883 = vst.msk [vmem:[%s17] sm:$0x3] %vm1882, %v1881
    // Predicated region
    $region78: #{critic_forward.1} parent=1 // pred_check
      _
    $region79: #{critic_forward.1} parent=1 // pred_check_branch
      %1885 = sbr.rel (0) target = $region81
    $region80: #{critic_forward.1} parent=1 // pred_region
      _
    $region81: #{critic_forward.1} parent=1 // pred_fallthru
      _
    // Predicated region
    $region82: #{critic_forward.1} parent=1 // pred_check
      _
    $region83: #{critic_forward.1} parent=1 // pred_check_branch
      %1887 = sbr.rel (0) target = $region85
    $region84: #{critic_forward.1} parent=1 // pred_region
      _
    $region85: #{critic_forward.1} parent=1 // pred_fallthru
      _
    %1888 = vsyncpa [#allocation4], 1
    %1889 = vsyncpa [#allocation6], 1

</llo_original>
